<compile_context>
chip_gen: v7x
topology: tpu7x:2x2x1
jax: 0.10.0
libtpu: 0.0.40
codegen_flags: <defaults>
</compile_context>

<pallas_src>
import jax
import jax.numpy as jnp
from jax.experimental import pallas as pl
from jax.experimental.pallas import tpu as pltpu


def _round_up(a, b):
    return ((a + b - 1) // b) * b


def _aux_head_kernel(x_ref, wbig_ref, b1_ref, w2_ref, b2_ref, wfc_ref, bfc_ref,
                     out_ref):
    """x_ref: (TN, 49*C) f32, NCHW-flattened rows. out_ref: (TN, NC_PAD) bf16."""
    # ReLU (order w.r.t. the bf16 cast is immaterial for max-with-0), then bf16
    # for the MXU.  Elementwise math stays f32 before the cast (v5e-safe).
    x = jnp.maximum(x_ref[...], 0.0).astype(jnp.bfloat16)

    # Fused ReLU->AvgPool(5,s2)->Conv1(1x1)->BN1-scale: one (TN,49C)@(49C,512)
    # matmul; columns are position-major / channel-minor, i.e. already the
    # flattened 2x2x128 layout the 2x2 conv consumes (no concats / regroup).
    h1 = jnp.dot(x, wbig_ref[...], preferred_element_type=jnp.float32)
    h1 = jnp.maximum(h1 + b1_ref[...], 0.0)                   # BN1 bias + ReLU

    # Fused Conv2(2x2)->BN2-scale: one (TN, 512) @ (512, 768) matmul.
    h2 = jnp.dot(h1.astype(jnp.bfloat16), w2_ref[...],
                 preferred_element_type=jnp.float32)
    h2 = jnp.maximum(h2 + b2_ref[...], 0.0)                   # BN2 bias + ReLU

    # Classifier; lane-dense padded output, bf16 writeback (halved HBM bytes).
    logits = jnp.dot(h2.astype(jnp.bfloat16), wfc_ref[...],
                     preferred_element_type=jnp.float32) + bfc_ref[...]
    out_ref[...] = logits.astype(out_ref.dtype)


def _pick_batch_tile(n, k, nc_pad, out_bytes=2, budget=44 * 1024 * 1024):
    """Largest batch tile (<=256) whose VMEM footprint fits a v7x-safe budget."""
    # Resident weights (default double-buffered, bf16) + f32 biases.
    w_bytes = (2 * 2 * (k * 512 + 512 * 768 + 768 * nc_pad)
               + 2 * 4 * (512 + 768 + nc_pad))

    def step_bytes(tn):
        x_buf = 2 * tn * k * 4                      # f32 input tile, 2 buffers
        o_buf = 2 * tn * nc_pad * out_bytes         # bf16 output tile, 2 buffers
        live = tn * (k * 2 + (512 + 768) * 6 + nc_pad * 4)   # bf16 x, h1/h2, logits
        return x_buf + o_buf + live

    if n <= 16:
        tn = n                                      # single full-batch block
    else:
        # >= 2 grid steps so v7x can shard the "parallel" axis over its 2 TCs.
        tn = min(256, _round_up(pl.cdiv(n, 2), 16))
        while tn > 16 and w_bytes + step_bytes(tn) > budget:
            tn -= 16
    return tn, w_bytes + step_bytes(tn)


def aux_head_forward(x_nchw, params):
    """Pallas forward of AuxiliaryHeadImageNet. x_nchw: (N, C, 7, 7) float32."""
    x_nchw = x_nchw.astype(jnp.float32)
    N, C, H, W = x_nchw.shape
    assert (H, W) == (7, 7), "aux head expects a 7x7 feature map"
    num_classes = params["fc_w"].shape[0]
    nc_pad = _round_up(num_classes, 128)
    eps = 1e-5
    K = C * H * W                                   # 49*C

    # FREE reshape of contiguous NCHW -- no transpose / cast pass before the
    # kernel; column order is (c, h, w)-major, matched by W_big's rows.
    x2d = x_nchw.reshape(N, K)

    # Fold eval-mode BN into scale / bias.
    s1 = params["bn1_gamma"] / jnp.sqrt(params["bn1_var"] + eps)
    b1 = params["bn1_beta"] - params["bn1_mean"] * s1
    s2 = params["bn2_gamma"] / jnp.sqrt(params["bn2_var"] + eps)
    b2 = params["bn2_beta"] - params["bn2_mean"] * s2

    # Pooling masks of the four 5x5 / stride-2 windows on the 7x7 map.
    r = jnp.arange(7)
    ph = jnp.array([0, 0, 1, 1])
    pw = jnp.array([0, 1, 0, 1])
    mh = (r[None, :] >= 2 * ph[:, None]) & (r[None, :] < 2 * ph[:, None] + 5)
    mw = (r[None, :] >= 2 * pw[:, None]) & (r[None, :] < 2 * pw[:, None] + 5)
    mask = (mh[:, :, None] & mw[:, None, :]).astype(jnp.float32) / 25.0  # (4,7,7)

    # W_big[(c,h,w), (p,o)] = mask[p,h,w] * conv1_w[o,c] * s1[o]  (1/25 folded).
    w1s = params["conv1_w"].reshape(128, C) * s1[:, None]                # (128,C)
    w_big = jnp.einsum("phw,oc->chwpo", mask, w1s).reshape(K, 512)
    w_big = w_big.astype(jnp.bfloat16)
    b1_big = jnp.tile(b1, 4).reshape(1, 512).astype(jnp.float32)

    # 2x2 conv as (512, 768): rows (kh,kw)-major, channel-minor = p*128 + c1.
    w2 = (jnp.transpose(params["conv2_w"], (2, 3, 1, 0)).reshape(512, 768)
          * s2[None, :]).astype(jnp.bfloat16)
    b2_big = b2.reshape(1, 768).astype(jnp.float32)

    # Classifier padded to a multiple of 128 outputs (lane-dense stores).
    wfc = jnp.zeros((768, nc_pad), jnp.float32)
    wfc = wfc.at[:, :num_classes].set(params["fc_w"].T).astype(jnp.bfloat16)
    bfc = jnp.zeros((1, nc_pad), jnp.float32)
    bfc = bfc.at[0, :num_classes].set(params["fc_b"])

    tn, est_vmem = _pick_batch_tile(N, K, nc_pad)
    grid = (pl.cdiv(N, tn),)
    # Size-derived VMEM limit with headroom (v7x has 64 MiB/TC; never exceed it).
    vmem_limit = int(min(60 * 2**20, max(32 * 2**20, est_vmem + 8 * 2**20)))

    # NOTE: single-buffering the constant-index weights (pipeline_mode=
    # pl.Buffered(1)) would free ~half their VMEM, but is skipped here for
    # portability; the budget above already accounts for double buffers.
    out = pl.pallas_call(
        _aux_head_kernel,
        out_shape=jax.ShapeDtypeStruct((N, nc_pad), jnp.bfloat16),
        grid=grid,
        in_specs=[
            pl.BlockSpec((tn, K), lambda i: (i, 0)),        # x (pipelined)
            pl.BlockSpec((K, 512), lambda i: (0, 0)),       # W_big (resident)
            pl.BlockSpec((1, 512), lambda i: (0, 0)),       # b1 (tiled x4)
            pl.BlockSpec((512, 768), lambda i: (0, 0)),     # w2
            pl.BlockSpec((1, 768), lambda i: (0, 0)),       # b2
            pl.BlockSpec((768, nc_pad), lambda i: (0, 0)),  # wfc
            pl.BlockSpec((1, nc_pad), lambda i: (0, 0)),    # bfc
        ],
        out_specs=pl.BlockSpec((tn, nc_pad), lambda i: (i, 0)),
        compiler_params=pltpu.CompilerParams(
            dimension_semantics=("parallel",),
            vmem_limit_bytes=vmem_limit),
    )(x2d, w_big, b1_big, w2, b2_big, wfc, bfc)

    # Slice off lane padding; the module's logits are f32 downstream.
    return out[:, :num_classes].astype(jnp.float32)


def aux_head_reference(x_nchw, params):
    """Pure-JAX f32 reference mirroring the PyTorch forward (eval-mode BN)."""
    eps = 1e-5

    def bn(x, g, b, m, v):
        return (x - m[None, :, None, None]) / jnp.sqrt(v + eps)[None, :, None, None] \
            * g[None, :, None, None] + b[None, :, None, None]

    x = jnp.maximum(x_nchw, 0.0)
    x = jax.lax.reduce_window(x, 0.0, jax.lax.add,
                              (1, 1, 5, 5), (1, 1, 2, 2), "VALID") / 25.0
    x = jax.lax.conv_general_dilated(
        x, params["conv1_w"], (1, 1), "VALID",
        dimension_numbers=("NCHW", "OIHW", "NCHW"))
    x = jnp.maximum(bn(x, params["bn1_gamma"], params["bn1_beta"],
                       params["bn1_mean"], params["bn1_var"]), 0.0)
    x = jax.lax.conv_general_dilated(
        x, params["conv2_w"], (1, 1), "VALID",
        dimension_numbers=("NCHW", "OIHW", "NCHW"))
    x = jnp.maximum(bn(x, params["bn2_gamma"], params["bn2_beta"],
                       params["bn2_mean"], params["bn2_var"]), 0.0)
    x = x.reshape(x.shape[0], -1)
    return x @ params["fc_w"].T + params["fc_b"][None, :]


if __name__ == "__main__":
    N, C, H, W, num_classes = 2, 16, 7, 7, 10
    key = jax.random.PRNGKey(0)
    ks = jax.random.split(key, 13)

    x = jax.random.normal(ks[0], (N, C, H, W), jnp.float32)
    params = {
        "conv1_w": 0.10 * jax.random.normal(ks[1], (128, C, 1, 1), jnp.float32),
        "conv2_w": 0.05 * jax.random.normal(ks[2], (768, 128, 2, 2), jnp.float32),
        "bn1_gamma": 1.0 + 0.1 * jax.random.normal(ks[3], (128,), jnp.float32),
        "bn1_beta": 0.1 * jax.random.normal(ks[4], (128,), jnp.float32),
        "bn1_mean": 0.1 * jax.random.normal(ks[5], (128,), jnp.float32),
        "bn1_var": jnp.abs(jax.random.normal(ks[6], (128,), jnp.float32)) + 0.5,
        "bn2_gamma": 1.0 + 0.1 * jax.random.normal(ks[7], (768,), jnp.float32),
        "bn2_beta": 0.1 * jax.random.normal(ks[8], (768,), jnp.float32),
        "bn2_mean": 0.1 * jax.random.normal(ks[9], (768,), jnp.float32),
        "bn2_var": jnp.abs(jax.random.normal(ks[10], (768,), jnp.float32)) + 0.5,
        "fc_w": 0.05 * jax.random.normal(ks[11], (num_classes, 768), jnp.float32),
        "fc_b": 0.1 * jax.random.normal(ks[12], (num_classes,), jnp.float32),
    }

    out = jax.block_until_ready(aux_head_forward(x, params))
    assert out.shape == (N, num_classes), out.shape

    ref = jax.block_until_ready(aux_head_reference(x, params))
    # bf16 matmul + bf16 logit writeback (deliberate perf trade) vs f32 reference.
    assert jnp.allclose(out, ref, atol=3e-2, rtol=3e-2), \
        f"max abs err {jnp.max(jnp.abs(out - ref))}"

    print("KERNEL_OK")
</pallas_src>

<mosaic_0001>
module attributes {stable_mosaic.version = 11 : i64} {
  func.func @_aux_head_kernel(%arg0: i32, %arg1: memref<2x784xf32, #tpu.memory_space<vmem>>, %arg2: memref<784x512xbf16, #tpu.memory_space<vmem>>, %arg3: memref<1x512xf32, #tpu.memory_space<vmem>>, %arg4: memref<512x768xbf16, #tpu.memory_space<vmem>>, %arg5: memref<1x768xf32, #tpu.memory_space<vmem>>, %arg6: memref<768x128xbf16, #tpu.memory_space<vmem>>, %arg7: memref<1x128xf32, #tpu.memory_space<vmem>>, %arg8: memref<2x128xbf16, #tpu.memory_space<vmem>>) attributes {dimension_semantics = [#tpu.dimension_semantics<parallel>], iteration_bounds = array<i64: 1>, scalar_prefetch = 0 : i64, scratch_operands = 0 : i64, tpu.core_type = #tpu.core_type<tc>, window_params = [{transform_indices = @transform_0, window_bounds = array<i64: 2, 784>}, {pipeline_mode = #tpu.pipeline_mode<synchronous>, transform_indices = @transform_1, window_bounds = array<i64: 784, 512>}, {pipeline_mode = #tpu.pipeline_mode<synchronous>, transform_indices = @transform_2, window_bounds = array<i64: 1, 512>}, {pipeline_mode = #tpu.pipeline_mode<synchronous>, transform_indices = @transform_3, window_bounds = array<i64: 512, 768>}, {pipeline_mode = #tpu.pipeline_mode<synchronous>, transform_indices = @transform_4, window_bounds = array<i64: 1, 768>}, {pipeline_mode = #tpu.pipeline_mode<synchronous>, transform_indices = @transform_5, window_bounds = array<i64: 768, 128>}, {pipeline_mode = #tpu.pipeline_mode<synchronous>, transform_indices = @transform_6, window_bounds = array<i64: 1, 128>}, {transform_indices = @transform_7, window_bounds = array<i64: 2, 128>}]} {
    %c0 = arith.constant 0 : index
    %c0_0 = arith.constant 0 : index
    %0 = vector.load %arg1[%c0, %c0_0] : memref<2x784xf32, #tpu.memory_space<vmem>>, vector<2x784xf32>
    %cst = arith.constant 0.000000e+00 : f32
    %1 = vector.broadcast %cst : f32 to vector<2x784xf32>
    %2 = arith.maximumf %0, %1 : vector<2x784xf32>
    %3 = arith.truncf %2 : vector<2x784xf32> to vector<2x784xbf16>
    %c0_1 = arith.constant 0 : index
    %c0_2 = arith.constant 0 : index
    %4 = vector.load %arg2[%c0_1, %c0_2] : memref<784x512xbf16, #tpu.memory_space<vmem>>, vector<784x512xbf16>
    %cst_3 = arith.constant dense<0.000000e+00> : vector<2x512xf32>
    %5 = tpu.matmul %3, %4, %cst_3 {dimension_numbers = #tpu.dot_dimension_numbers<[1], [0], [0], [1], [0, 0, 1, 1], [], []>} : vector<2x784xbf16>, vector<784x512xbf16>, vector<2x512xf32> -> vector<2x512xf32>
    %c0_4 = arith.constant 0 : index
    %c0_5 = arith.constant 0 : index
    %6 = vector.load %arg3[%c0_4, %c0_5] : memref<1x512xf32, #tpu.memory_space<vmem>>, vector<1x512xf32>
    %7 = vector.broadcast %6 : vector<1x512xf32> to vector<2x512xf32>
    %8 = arith.addf %5, %7 : vector<2x512xf32>
    %cst_6 = arith.constant 0.000000e+00 : f32
    %9 = vector.broadcast %cst_6 : f32 to vector<2x512xf32>
    %10 = arith.maximumf %8, %9 : vector<2x512xf32>
    %11 = arith.truncf %10 : vector<2x512xf32> to vector<2x512xbf16>
    %c0_7 = arith.constant 0 : index
    %c0_8 = arith.constant 0 : index
    %12 = vector.load %arg4[%c0_7, %c0_8] : memref<512x768xbf16, #tpu.memory_space<vmem>>, vector<512x768xbf16>
    %cst_9 = arith.constant dense<0.000000e+00> : vector<2x768xf32>
    %13 = tpu.matmul %11, %12, %cst_9 {dimension_numbers = #tpu.dot_dimension_numbers<[1], [0], [0], [1], [0, 0, 1, 1], [], []>} : vector<2x512xbf16>, vector<512x768xbf16>, vector<2x768xf32> -> vector<2x768xf32>
    %c0_10 = arith.constant 0 : index
    %c0_11 = arith.constant 0 : index
    %14 = vector.load %arg5[%c0_10, %c0_11] : memref<1x768xf32, #tpu.memory_space<vmem>>, vector<1x768xf32>
    %15 = vector.broadcast %14 : vector<1x768xf32> to vector<2x768xf32>
    %16 = arith.addf %13, %15 : vector<2x768xf32>
    %cst_12 = arith.constant 0.000000e+00 : f32
    %17 = vector.broadcast %cst_12 : f32 to vector<2x768xf32>
    %18 = arith.maximumf %16, %17 : vector<2x768xf32>
    %19 = arith.truncf %18 : vector<2x768xf32> to vector<2x768xbf16>
    %c0_13 = arith.constant 0 : index
    %c0_14 = arith.constant 0 : index
    %20 = vector.load %arg6[%c0_13, %c0_14] : memref<768x128xbf16, #tpu.memory_space<vmem>>, vector<768x128xbf16>
    %cst_15 = arith.constant dense<0.000000e+00> : vector<2x128xf32>
    %21 = tpu.matmul %19, %20, %cst_15 {dimension_numbers = #tpu.dot_dimension_numbers<[1], [0], [0], [1], [0, 0, 1, 1], [], []>} : vector<2x768xbf16>, vector<768x128xbf16>, vector<2x128xf32> -> vector<2x128xf32>
    %c0_16 = arith.constant 0 : index
    %c0_17 = arith.constant 0 : index
    %22 = vector.load %arg7[%c0_16, %c0_17] : memref<1x128xf32, #tpu.memory_space<vmem>>, vector<1x128xf32>
    %23 = vector.broadcast %22 : vector<1x128xf32> to vector<2x128xf32>
    %24 = arith.addf %21, %23 : vector<2x128xf32>
    %25 = arith.truncf %24 : vector<2x128xf32> to vector<2x128xbf16>
    %c0_18 = arith.constant 0 : index
    %c0_19 = arith.constant 0 : index
    %26 = vector.load %arg8[%c0_18, %c0_19] : memref<2x128xbf16, #tpu.memory_space<vmem>>, vector<2x128xbf16>
    tpu.vector_store %arg8[%c0_18, %c0_19], %25 {strides = array<i32>} : memref<2x128xbf16, #tpu.memory_space<vmem>>, vector<2x128xbf16>,
    return
  }
  func.func @transform_0(%arg0: i32) -> (i32, i32) {
    %c0_i32 = arith.constant 0 : i32
    %c0_i32_0 = arith.constant 0 : i32
    return %arg0, %c0_i32 : i32, i32
  }
  func.func @transform_1(%arg0: i32) -> (i32, i32) {
    %c0_i32 = arith.constant 0 : i32
    %c0_i32_0 = arith.constant 0 : i32
    %c0_i32_1 = arith.constant 0 : i32
    return %c0_i32, %c0_i32_0 : i32, i32
  }
  func.func @transform_2(%arg0: i32) -> (i32, i32) {
    %c0_i32 = arith.constant 0 : i32
    %c0_i32_0 = arith.constant 0 : i32
    %c0_i32_1 = arith.constant 0 : i32
    return %c0_i32, %c0_i32_0 : i32, i32
  }
  func.func @transform_3(%arg0: i32) -> (i32, i32) {
    %c0_i32 = arith.constant 0 : i32
    %c0_i32_0 = arith.constant 0 : i32
    %c0_i32_1 = arith.constant 0 : i32
    return %c0_i32, %c0_i32_0 : i32, i32
  }
  func.func @transform_4(%arg0: i32) -> (i32, i32) {
    %c0_i32 = arith.constant 0 : i32
    %c0_i32_0 = arith.constant 0 : i32
    %c0_i32_1 = arith.constant 0 : i32
    return %c0_i32, %c0_i32_0 : i32, i32
  }
  func.func @transform_5(%arg0: i32) -> (i32, i32) {
    %c0_i32 = arith.constant 0 : i32
    %c0_i32_0 = arith.constant 0 : i32
    %c0_i32_1 = arith.constant 0 : i32
    return %c0_i32, %c0_i32_0 : i32, i32
  }
  func.func @transform_6(%arg0: i32) -> (i32, i32) {
    %c0_i32 = arith.constant 0 : i32
    %c0_i32_0 = arith.constant 0 : i32
    %c0_i32_1 = arith.constant 0 : i32
    return %c0_i32, %c0_i32_0 : i32, i32
  }
  func.func @transform_7(%arg0: i32) -> (i32, i32) {
    %c0_i32 = arith.constant 0 : i32
    %c0_i32_0 = arith.constant 0 : i32
    return %arg0, %c0_i32 : i32, i32
  }
}

</mosaic_0001>

<llo_original>
// kernel: tpu_custom_call.1
$region0: #{tpu_custom_call.1}
  #allocation0 [shape = 'u32[]', space=smem, size = 0x4, offset = 0x4, fixed_abs, tag = 'smem constant byte address 0x4 - core index']
  #allocation1 [shape = 'u32[144,128]{1,0:T(1,128)}', space=vmem, size = 0x12000, scoped, tag = 'internal scratch']
  %s0 = inlined_call_operand.hbm [shape: f32[2,784], index: 0, kind: input, shape index: {}]
  %s1 = inlined_call_operand.hbm [shape: bf16[784,512], index: 1, kind: input, shape index: {}]
  %s2 = inlined_call_operand.vmem [shape: f32[1,512], index: 2, kind: input, shape index: {}]
  %s3 = inlined_call_operand.hbm [shape: bf16[512,768], index: 3, kind: input, shape index: {}]
  %s4 = inlined_call_operand.vmem [shape: f32[1,768], index: 4, kind: input, shape index: {}]
  %s5 = inlined_call_operand.hbm [shape: bf16[768,128], index: 5, kind: input, shape index: {}]
  %s6 = inlined_call_operand.vmem [shape: f32[1,128], index: 6, kind: input, shape index: {}]
  %s7 = inlined_call_operand.hbm [shape: bf16[2,128], index: 7, kind: output, shape index: {}]
  %s8 = sld [smem:[#allocation0]]
  $region54: #{tpu_custom_call.1} parent=0
    _
  %s10 = ssub.s32 1, %s8
  %s11 = scalar_select 0, %s10, %s8
  $region1: #{tpu_custom_call.1} parent=0
    #allocation2 [shape = 'u8[7168]{0}', space=vmem, size = 0x1c00, scoped, tag = 'input window, operand 0, single buffered']
    #allocation3 [shape = 's32[1]{0}', space=sflag, size = 0x4, scoped, tag = 'scoped memory for tpu_custom_call.1']
    #allocation4 [shape = 's32[1]{0}', space=sflag, size = 0x4, scoped, tag = 'scoped memory for tpu_custom_call.1']
    #allocation5 [shape = 'u8[802816]{0}', space=vmem, size = 0xc4000, scoped, tag = 'input window, operand 1, single buffered']
    #allocation6 [shape = 's32[1]{0}', space=sflag, size = 0x4, scoped, tag = 'scoped memory for tpu_custom_call.1']
    #allocation7 [shape = 'u8[786432]{0}', space=vmem, size = 0xc0000, scoped, tag = 'input window, operand 3, single buffered']
    #allocation8 [shape = 'u8[196608]{0}', space=vmem, size = 0x30000, scoped, tag = 'input window, operand 5, single buffered']
    #allocation9 [shape = 's32[1]{0}', space=sflag, size = 0x4, scoped, tag = 'scoped memory for tpu_custom_call.1']
    #allocation10 [shape = 'u8[512]{0}', space=vmem, size = 0x400, scoped, tag = 'output window, operand 0, single buffered']
    %12 = vsyncpa [#allocation3], 0
    %13 = vsyncpa [#allocation6], 0
    %14 = vsyncpa [#allocation9], 0
    %15 = vsyncpa [#allocation4], 0
    // Predicated region
    $region2: #{tpu_custom_call.1} parent=1 // pred_check
      _
    $region3: #{tpu_custom_call.1} parent=1 // pred_check_branch
      %17 = sbr.rel (0) target = $region5
    $region4: #{tpu_custom_call.1} parent=1 // pred_region
      %s19 = ssub.s32 224, 224
      %20 = vsyncadd [#allocation3], %s19
      %s22 = sshll.u32 [#allocation2], 4
      %s23 = int_to_ptr.vmem [resolvable:$true] %s22
      %25 = dma.hbm_to_vmem [thread:$0]  %s0, 224, %s23, [#allocation3]
    $region5: #{tpu_custom_call.1} parent=1 // pred_fallthru
      _
    // Predicated region
    $region6: #{tpu_custom_call.1} parent=1 // pred_check
      _
    $region7: #{tpu_custom_call.1} parent=1 // pred_check_branch
      %27 = sbr.rel (0) target = $region9
    $region8: #{tpu_custom_call.1} parent=1 // pred_region
      %s29 = ssub.s32 25088, 25088
      %30 = vsyncadd [#allocation6], %s29
      %s31 = sshll.u32 [#allocation5], 4
      %s32 = int_to_ptr.vmem [resolvable:$true] %s31
      %37 = dma.hbm_to_vmem [thread:$0]  %s1, 25088, %s32, [#allocation6], 256, 256, 16
    $region9: #{tpu_custom_call.1} parent=1 // pred_fallthru
      _
    // Predicated region
    $region10: #{tpu_custom_call.1} parent=1 // pred_check
      _
    $region11: #{tpu_custom_call.1} parent=1 // pred_check_branch
      %39 = sbr.rel (0) target = $region13
    $region12: #{tpu_custom_call.1} parent=1 // pred_region
      _
    $region13: #{tpu_custom_call.1} parent=1 // pred_fallthru
      _
    // Predicated region
    $region14: #{tpu_custom_call.1} parent=1 // pred_check
      _
    $region15: #{tpu_custom_call.1} parent=1 // pred_check_branch
      %41 = sbr.rel (0) target = $region17
    $region16: #{tpu_custom_call.1} parent=1 // pred_region
      %s43 = ssub.s32 24576, 24576
      %44 = vsyncadd [#allocation6], %s43
      %s45 = sshll.u32 [#allocation7], 4
      %s46 = int_to_ptr.vmem [resolvable:$true] %s45
      %51 = dma.hbm_to_vmem [thread:$0]  %s3, 24576, %s46, [#allocation6], 384, 384, 24
    $region17: #{tpu_custom_call.1} parent=1 // pred_fallthru
      _
    // Predicated region
    $region18: #{tpu_custom_call.1} parent=1 // pred_check
      _
    $region19: #{tpu_custom_call.1} parent=1 // pred_check_branch
      %53 = sbr.rel (0) target = $region21
    $region20: #{tpu_custom_call.1} parent=1 // pred_region
      _
    $region21: #{tpu_custom_call.1} parent=1 // pred_fallthru
      _
    // Predicated region
    $region22: #{tpu_custom_call.1} parent=1 // pred_check
      _
    $region23: #{tpu_custom_call.1} parent=1 // pred_check_branch
      %55 = sbr.rel (0) target = $region25
    $region24: #{tpu_custom_call.1} parent=1 // pred_region
      %s57 = ssub.s32 6144, 6144
      %58 = vsyncadd [#allocation9], %s57
      %s59 = sshll.u32 [#allocation8], 4
      %s60 = int_to_ptr.vmem [resolvable:$true] %s59
      %65 = dma.hbm_to_vmem [thread:$0]  %s5, 6144, %s60, [#allocation9], 64, 64, 4
    $region25: #{tpu_custom_call.1} parent=1 // pred_fallthru
      _
    // Predicated region
    $region26: #{tpu_custom_call.1} parent=1 // pred_check
      _
    $region27: #{tpu_custom_call.1} parent=1 // pred_check_branch
      %67 = sbr.rel (0) target = $region29
    $region28: #{tpu_custom_call.1} parent=1 // pred_region
      _
    $region29: #{tpu_custom_call.1} parent=1 // pred_fallthru
      _
    // Predicated region
    $region30: #{tpu_custom_call.1} parent=1 // pred_check
      _
    $region31: #{tpu_custom_call.1} parent=1 // pred_check_branch
      %69 = sbr.rel (0) target = $region33
    $region32: #{tpu_custom_call.1} parent=1 // pred_region
      %70 = dma.done [#allocation3], 224
    $region33: #{tpu_custom_call.1} parent=1 // pred_fallthru
      _
    // Predicated region
    $region34: #{tpu_custom_call.1} parent=1 // pred_check
      _
    $region35: #{tpu_custom_call.1} parent=1 // pred_check_branch
      %72 = sbr.rel (0) target = $region37
    $region36: #{tpu_custom_call.1} parent=1 // pred_region
      %73 = dma.done [#allocation6], 25088
    $region37: #{tpu_custom_call.1} parent=1 // pred_fallthru
      _
    // Predicated region
    $region38: #{tpu_custom_call.1} parent=1 // pred_check
      _
    $region39: #{tpu_custom_call.1} parent=1 // pred_check_branch
      %75 = sbr.rel (0) target = $region41
    $region40: #{tpu_custom_call.1} parent=1 // pred_region
      %76 = dma.done [#allocation6], 24576
    $region41: #{tpu_custom_call.1} parent=1 // pred_fallthru
      _
    // Predicated region
    $region42: #{tpu_custom_call.1} parent=1 // pred_check
      _
    $region43: #{tpu_custom_call.1} parent=1 // pred_check_branch
      %78 = sbr.rel (0) target = $region45
    $region44: #{tpu_custom_call.1} parent=1 // pred_region
      %79 = dma.done [#allocation9], 6144
    $region45: #{tpu_custom_call.1} parent=1 // pred_fallthru
      _
    %v81 = vld [vmem:[#allocation2] sm:$0xff]
    %v82 = vld [vmem:[#allocation2 + $0x8] sm:$0x3f]
    %v83 = vmax.f32 %v81, 0.0
    %v84 = vmax.f32 %v82, 0.0
    %v87 = vcombine.high %v83, %v83
    %v89 = vunpack.c.l.s4 1983009808
    %v90 = vunpack.c.0.s8 %v89
    %v91 = vlaneseq
    %v92 = vshrl.u32 %v91, 7
    %v93 = vsub.s32 %v90, %v92
    %v94 = vrot.slane %v83, %v93
    %v96 = vunpack.c.l.s4 1983009808
    %v97 = vunpack.c.0.s8 %v96
    %v98 = vlaneseq
    %v99 = vshrl.u32 %v98, 7
    %v100 = vsub.s32 %v97, %v99
    %v101 = vrot.slane %v87, %v100
    %v102 = vcombine.high %v94, %v94
    %v103 = vcombine.high %v101, %v101
    %v104 = vcombine.high %v84, %v84
    %v106 = vunpack.c.l.s4 1983009808
    %v107 = vunpack.c.0.s8 %v106
    %v108 = vlaneseq
    %v109 = vshrl.u32 %v108, 7
    %v110 = vsub.s32 %v107, %v109
    %v111 = vrot.slane %v84, %v110
    %v113 = vunpack.c.l.s4 1983009808
    %v114 = vunpack.c.0.s8 %v113
    %v115 = vlaneseq
    %v116 = vshrl.u32 %v115, 7
    %v117 = vsub.s32 %v114, %v116
    %v118 = vrot.slane %v104, %v117
    %v119 = vcombine.high %v111, %v111
    %v127 = vpack.c.bf16 %v94, %v94
    %v128 = vpack.c.bf16 %v102, %v102
    %v129 = vpack.c.bf16 %v101, %v101
    %v130 = vpack.c.bf16 %v103, %v103
    %v131 = vpack.c.bf16 %v111, %v111
    %v132 = vpack.c.bf16 %v119, %v119
    %v133 = vpack.c.bf16 %v118, %v118
    %v134 = vld [vmem:[#allocation5] sm:$0xff]
    %v135 = vld [vmem:[#allocation5 + $0x8] sm:$0xff]
    %v136 = vld [vmem:[#allocation5 + $0x10] sm:$0xff]
    %v137 = vld [vmem:[#allocation5 + $0x18] sm:$0xff]
    %v138 = vld [vmem:[#allocation5 + $0x20] sm:$0xff]
    %v139 = vld [vmem:[#allocation5 + $0x28] sm:$0xff]
    %v140 = vld [vmem:[#allocation5 + $0x30] sm:$0xff]
    %v141 = vld [vmem:[#allocation5 + $0x38] sm:$0xff]
    %v142 = vld [vmem:[#allocation5 + $0x40] sm:$0xff]
    %v143 = vld [vmem:[#allocation5 + $0x48] sm:$0xff]
    %v144 = vld [vmem:[#allocation5 + $0x50] sm:$0xff]
    %v145 = vld [vmem:[#allocation5 + $0x58] sm:$0xff]
    %v146 = vld [vmem:[#allocation5 + $0x60] sm:$0xff]
    %v147 = vld [vmem:[#allocation5 + $0x68] sm:$0xff]
    %v148 = vld [vmem:[#allocation5 + $0x70] sm:$0xff]
    %v149 = vld [vmem:[#allocation5 + $0x78] sm:$0xff]
    %v150 = vld [vmem:[#allocation5 + $0x80] sm:$0xff]
    %v151 = vld [vmem:[#allocation5 + $0x88] sm:$0xff]
    %v152 = vld [vmem:[#allocation5 + $0x90] sm:$0xff]
    %v153 = vld [vmem:[#allocation5 + $0x98] sm:$0xff]
    %v154 = vld [vmem:[#allocation5 + $0xa0] sm:$0xff]
    %v155 = vld [vmem:[#allocation5 + $0xa8] sm:$0xff]
    %v156 = vld [vmem:[#allocation5 + $0xb0] sm:$0xff]
    %v157 = vld [vmem:[#allocation5 + $0xb8] sm:$0xff]
    %v158 = vld [vmem:[#allocation5 + $0xc0] sm:$0xff]
    %v159 = vld [vmem:[#allocation5 + $0xc8] sm:$0xff]
    %v160 = vld [vmem:[#allocation5 + $0xd0] sm:$0xff]
    %v161 = vld [vmem:[#allocation5 + $0xd8] sm:$0xff]
    %v162 = vld [vmem:[#allocation5 + $0xe0] sm:$0xff]
    %v163 = vld [vmem:[#allocation5 + $0xe8] sm:$0xff]
    %v164 = vld [vmem:[#allocation5 + $0xf0] sm:$0xff]
    %v165 = vld [vmem:[#allocation5 + $0xf8] sm:$0xff]
    %v166 = vld [vmem:[#allocation5 + $0x100] sm:$0xff]
    %v167 = vld [vmem:[#allocation5 + $0x108] sm:$0xff]
    %v168 = vld [vmem:[#allocation5 + $0x110] sm:$0xff]
    %v169 = vld [vmem:[#allocation5 + $0x118] sm:$0xff]
    %v170 = vld [vmem:[#allocation5 + $0x120] sm:$0xff]
    %v171 = vld [vmem:[#allocation5 + $0x128] sm:$0xff]
    %v172 = vld [vmem:[#allocation5 + $0x130] sm:$0xff]
    %v173 = vld [vmem:[#allocation5 + $0x138] sm:$0xff]
    %v174 = vld [vmem:[#allocation5 + $0x140] sm:$0xff]
    %v175 = vld [vmem:[#allocation5 + $0x148] sm:$0xff]
    %v176 = vld [vmem:[#allocation5 + $0x150] sm:$0xff]
    %v177 = vld [vmem:[#allocation5 + $0x158] sm:$0xff]
    %v178 = vld [vmem:[#allocation5 + $0x160] sm:$0xff]
    %v179 = vld [vmem:[#allocation5 + $0x168] sm:$0xff]
    %v180 = vld [vmem:[#allocation5 + $0x170] sm:$0xff]
    %v181 = vld [vmem:[#allocation5 + $0x178] sm:$0xff]
    %v182 = vld [vmem:[#allocation5 + $0x180] sm:$0xff]
    %v183 = vld [vmem:[#allocation5 + $0x188] sm:$0xff]
    %v184 = vld [vmem:[#allocation5 + $0x190] sm:$0xff]
    %v185 = vld [vmem:[#allocation5 + $0x198] sm:$0xff]
    %v186 = vld [vmem:[#allocation5 + $0x1a0] sm:$0xff]
    %v187 = vld [vmem:[#allocation5 + $0x1a8] sm:$0xff]
    %v188 = vld [vmem:[#allocation5 + $0x1b0] sm:$0xff]
    %v189 = vld [vmem:[#allocation5 + $0x1b8] sm:$0xff]
    %v190 = vld [vmem:[#allocation5 + $0x1c0] sm:$0xff]
    %v191 = vld [vmem:[#allocation5 + $0x1c8] sm:$0xff]
    %v192 = vld [vmem:[#allocation5 + $0x1d0] sm:$0xff]
    %v193 = vld [vmem:[#allocation5 + $0x1d8] sm:$0xff]
    %v194 = vld [vmem:[#allocation5 + $0x1e0] sm:$0xff]
    %v195 = vld [vmem:[#allocation5 + $0x1e8] sm:$0xff]
    %v196 = vld [vmem:[#allocation5 + $0x1f0] sm:$0xff]
    %v197 = vld [vmem:[#allocation5 + $0x1f8] sm:$0xff]
    %v198 = vld [vmem:[#allocation5 + $0x200] sm:$0xff]
    %v199 = vld [vmem:[#allocation5 + $0x208] sm:$0xff]
    %v200 = vld [vmem:[#allocation5 + $0x210] sm:$0xff]
    %v201 = vld [vmem:[#allocation5 + $0x218] sm:$0xff]
    %v202 = vld [vmem:[#allocation5 + $0x220] sm:$0xff]
    %v203 = vld [vmem:[#allocation5 + $0x228] sm:$0xff]
    %v204 = vld [vmem:[#allocation5 + $0x230] sm:$0xff]
    %v205 = vld [vmem:[#allocation5 + $0x238] sm:$0xff]
    %v206 = vld [vmem:[#allocation5 + $0x240] sm:$0xff]
    %v207 = vld [vmem:[#allocation5 + $0x248] sm:$0xff]
    %v208 = vld [vmem:[#allocation5 + $0x250] sm:$0xff]
    %v209 = vld [vmem:[#allocation5 + $0x258] sm:$0xff]
    %v210 = vld [vmem:[#allocation5 + $0x260] sm:$0xff]
    %v211 = vld [vmem:[#allocation5 + $0x268] sm:$0xff]
    %v212 = vld [vmem:[#allocation5 + $0x270] sm:$0xff]
    %v213 = vld [vmem:[#allocation5 + $0x278] sm:$0xff]
    %v214 = vld [vmem:[#allocation5 + $0x280] sm:$0xff]
    %v215 = vld [vmem:[#allocation5 + $0x288] sm:$0xff]
    %v216 = vld [vmem:[#allocation5 + $0x290] sm:$0xff]
    %v217 = vld [vmem:[#allocation5 + $0x298] sm:$0xff]
    %v218 = vld [vmem:[#allocation5 + $0x2a0] sm:$0xff]
    %v219 = vld [vmem:[#allocation5 + $0x2a8] sm:$0xff]
    %v220 = vld [vmem:[#allocation5 + $0x2b0] sm:$0xff]
    %v221 = vld [vmem:[#allocation5 + $0x2b8] sm:$0xff]
    %v222 = vld [vmem:[#allocation5 + $0x2c0] sm:$0xff]
    %v223 = vld [vmem:[#allocation5 + $0x2c8] sm:$0xff]
    %v224 = vld [vmem:[#allocation5 + $0x2d0] sm:$0xff]
    %v225 = vld [vmem:[#allocation5 + $0x2d8] sm:$0xff]
    %v226 = vld [vmem:[#allocation5 + $0x2e0] sm:$0xff]
    %v227 = vld [vmem:[#allocation5 + $0x2e8] sm:$0xff]
    %v228 = vld [vmem:[#allocation5 + $0x2f0] sm:$0xff]
    %v229 = vld [vmem:[#allocation5 + $0x2f8] sm:$0xff]
    %v230 = vld [vmem:[#allocation5 + $0x300] sm:$0xff]
    %v231 = vld [vmem:[#allocation5 + $0x308] sm:$0xff]
    %v232 = vld [vmem:[#allocation5 + $0x310] sm:$0xff]
    %v233 = vld [vmem:[#allocation5 + $0x318] sm:$0xff]
    %v234 = vld [vmem:[#allocation5 + $0x320] sm:$0xff]
    %v235 = vld [vmem:[#allocation5 + $0x328] sm:$0xff]
    %v236 = vld [vmem:[#allocation5 + $0x330] sm:$0xff]
    %v237 = vld [vmem:[#allocation5 + $0x338] sm:$0xff]
    %v238 = vld [vmem:[#allocation5 + $0x340] sm:$0xff]
    %v239 = vld [vmem:[#allocation5 + $0x348] sm:$0xff]
    %v240 = vld [vmem:[#allocation5 + $0x350] sm:$0xff]
    %v241 = vld [vmem:[#allocation5 + $0x358] sm:$0xff]
    %v242 = vld [vmem:[#allocation5 + $0x360] sm:$0xff]
    %v243 = vld [vmem:[#allocation5 + $0x368] sm:$0xff]
    %v244 = vld [vmem:[#allocation5 + $0x370] sm:$0xff]
    %v245 = vld [vmem:[#allocation5 + $0x378] sm:$0xff]
    %v246 = vld [vmem:[#allocation5 + $0x380] sm:$0xff]
    %v247 = vld [vmem:[#allocation5 + $0x388] sm:$0xff]
    %v248 = vld [vmem:[#allocation5 + $0x390] sm:$0xff]
    %v249 = vld [vmem:[#allocation5 + $0x398] sm:$0xff]
    %v250 = vld [vmem:[#allocation5 + $0x3a0] sm:$0xff]
    %v251 = vld [vmem:[#allocation5 + $0x3a8] sm:$0xff]
    %v252 = vld [vmem:[#allocation5 + $0x3b0] sm:$0xff]
    %v253 = vld [vmem:[#allocation5 + $0x3b8] sm:$0xff]
    %v254 = vld [vmem:[#allocation5 + $0x3c0] sm:$0xff]
    %v255 = vld [vmem:[#allocation5 + $0x3c8] sm:$0xff]
    %v256 = vld [vmem:[#allocation5 + $0x3d0] sm:$0xff]
    %v257 = vld [vmem:[#allocation5 + $0x3d8] sm:$0xff]
    %v258 = vld [vmem:[#allocation5 + $0x3e0] sm:$0xff]
    %v259 = vld [vmem:[#allocation5 + $0x3e8] sm:$0xff]
    %v260 = vld [vmem:[#allocation5 + $0x3f0] sm:$0xff]
    %v261 = vld [vmem:[#allocation5 + $0x3f8] sm:$0xff]
    %v262 = vld [vmem:[#allocation5 + $0x400] sm:$0xff]
    %v263 = vld [vmem:[#allocation5 + $0x408] sm:$0xff]
    %v264 = vld [vmem:[#allocation5 + $0x410] sm:$0xff]
    %v265 = vld [vmem:[#allocation5 + $0x418] sm:$0xff]
    %v266 = vld [vmem:[#allocation5 + $0x420] sm:$0xff]
    %v267 = vld [vmem:[#allocation5 + $0x428] sm:$0xff]
    %v268 = vld [vmem:[#allocation5 + $0x430] sm:$0xff]
    %v269 = vld [vmem:[#allocation5 + $0x438] sm:$0xff]
    %v270 = vld [vmem:[#allocation5 + $0x440] sm:$0xff]
    %v271 = vld [vmem:[#allocation5 + $0x448] sm:$0xff]
    %v272 = vld [vmem:[#allocation5 + $0x450] sm:$0xff]
    %v273 = vld [vmem:[#allocation5 + $0x458] sm:$0xff]
    %v274 = vld [vmem:[#allocation5 + $0x460] sm:$0xff]
    %v275 = vld [vmem:[#allocation5 + $0x468] sm:$0xff]
    %v276 = vld [vmem:[#allocation5 + $0x470] sm:$0xff]
    %v277 = vld [vmem:[#allocation5 + $0x478] sm:$0xff]
    %v278 = vld [vmem:[#allocation5 + $0x480] sm:$0xff]
    %v279 = vld [vmem:[#allocation5 + $0x488] sm:$0xff]
    %v280 = vld [vmem:[#allocation5 + $0x490] sm:$0xff]
    %v281 = vld [vmem:[#allocation5 + $0x498] sm:$0xff]
    %v282 = vld [vmem:[#allocation5 + $0x4a0] sm:$0xff]
    %v283 = vld [vmem:[#allocation5 + $0x4a8] sm:$0xff]
    %v284 = vld [vmem:[#allocation5 + $0x4b0] sm:$0xff]
    %v285 = vld [vmem:[#allocation5 + $0x4b8] sm:$0xff]
    %v286 = vld [vmem:[#allocation5 + $0x4c0] sm:$0xff]
    %v287 = vld [vmem:[#allocation5 + $0x4c8] sm:$0xff]
    %v288 = vld [vmem:[#allocation5 + $0x4d0] sm:$0xff]
    %v289 = vld [vmem:[#allocation5 + $0x4d8] sm:$0xff]
    %v290 = vld [vmem:[#allocation5 + $0x4e0] sm:$0xff]
    %v291 = vld [vmem:[#allocation5 + $0x4e8] sm:$0xff]
    %v292 = vld [vmem:[#allocation5 + $0x4f0] sm:$0xff]
    %v293 = vld [vmem:[#allocation5 + $0x4f8] sm:$0xff]
    %v294 = vld [vmem:[#allocation5 + $0x500] sm:$0xff]
    %v295 = vld [vmem:[#allocation5 + $0x508] sm:$0xff]
    %v296 = vld [vmem:[#allocation5 + $0x510] sm:$0xff]
    %v297 = vld [vmem:[#allocation5 + $0x518] sm:$0xff]
    %v298 = vld [vmem:[#allocation5 + $0x520] sm:$0xff]
    %v299 = vld [vmem:[#allocation5 + $0x528] sm:$0xff]
    %v300 = vld [vmem:[#allocation5 + $0x530] sm:$0xff]
    %v301 = vld [vmem:[#allocation5 + $0x538] sm:$0xff]
    %v302 = vld [vmem:[#allocation5 + $0x540] sm:$0xff]
    %v303 = vld [vmem:[#allocation5 + $0x548] sm:$0xff]
    %v304 = vld [vmem:[#allocation5 + $0x550] sm:$0xff]
    %v305 = vld [vmem:[#allocation5 + $0x558] sm:$0xff]
    %v306 = vld [vmem:[#allocation5 + $0x560] sm:$0xff]
    %v307 = vld [vmem:[#allocation5 + $0x568] sm:$0xff]
    %v308 = vld [vmem:[#allocation5 + $0x570] sm:$0xff]
    %v309 = vld [vmem:[#allocation5 + $0x578] sm:$0xff]
    %v310 = vld [vmem:[#allocation5 + $0x580] sm:$0xff]
    %v311 = vld [vmem:[#allocation5 + $0x588] sm:$0xff]
    %v312 = vld [vmem:[#allocation5 + $0x590] sm:$0xff]
    %v313 = vld [vmem:[#allocation5 + $0x598] sm:$0xff]
    %v314 = vld [vmem:[#allocation5 + $0x5a0] sm:$0xff]
    %v315 = vld [vmem:[#allocation5 + $0x5a8] sm:$0xff]
    %v316 = vld [vmem:[#allocation5 + $0x5b0] sm:$0xff]
    %v317 = vld [vmem:[#allocation5 + $0x5b8] sm:$0xff]
    %v318 = vld [vmem:[#allocation5 + $0x5c0] sm:$0xff]
    %v319 = vld [vmem:[#allocation5 + $0x5c8] sm:$0xff]
    %v320 = vld [vmem:[#allocation5 + $0x5d0] sm:$0xff]
    %v321 = vld [vmem:[#allocation5 + $0x5d8] sm:$0xff]
    %v322 = vld [vmem:[#allocation5 + $0x5e0] sm:$0xff]
    %v323 = vld [vmem:[#allocation5 + $0x5e8] sm:$0xff]
    %v324 = vld [vmem:[#allocation5 + $0x5f0] sm:$0xff]
    %v325 = vld [vmem:[#allocation5 + $0x5f8] sm:$0xff]
    %v326 = vld [vmem:[#allocation5 + $0x600] sm:$0xff]
    %v327 = vld [vmem:[#allocation5 + $0x608] sm:$0xff]
    %v328 = vld [vmem:[#allocation5 + $0x610] sm:$0xff]
    %v329 = vld [vmem:[#allocation5 + $0x618] sm:$0xff]
    %v330 = vld [vmem:[%s2] sm:$0xf]
    %v332 = vlaneseq
    %v333 = vshrl.u32 %v332, 7
    %v334 = vsub.s32 0, %v333
    %v335 = vrot.slane %v330, %v334
    %v336 = vlaneseq
    %v337 = vshrl.u32 %v336, 7
    %v338 = vsub.s32 1, %v337
    %v339 = vrot.slane %v330, %v338
    %v340 = vlaneseq
    %v341 = vshrl.u32 %v340, 7
    %v342 = vsub.s32 2, %v341
    %v343 = vrot.slane %v330, %v342
    %v344 = vlaneseq
    %v345 = vshrl.u32 %v344, 7
    %v346 = vsub.s32 3, %v345
    %v347 = vrot.slane %v330, %v346
    %v548 = vunpack.c.l.b16 %v134
    %v549 = vunpack.c.h.b16 %v134
    %v550 = vunpack.c.l.b16 %v135
    %v551 = vunpack.c.h.b16 %v135
    %v552 = vunpack.c.l.b16 %v136
    %v553 = vunpack.c.h.b16 %v136
    %v554 = vunpack.c.l.b16 %v137
    %v555 = vunpack.c.h.b16 %v137
    %v556 = vunpack.c.l.b16 %v138
    %v557 = vunpack.c.h.b16 %v138
    %v558 = vunpack.c.l.b16 %v139
    %v559 = vunpack.c.h.b16 %v139
    %v560 = vunpack.c.l.b16 %v140
    %v561 = vunpack.c.h.b16 %v140
    %v562 = vunpack.c.l.b16 %v141
    %v563 = vunpack.c.h.b16 %v141
    %v564 = vunpack.c.l.b16 %v142
    %v565 = vunpack.c.h.b16 %v142
    %v566 = vunpack.c.l.b16 %v143
    %v567 = vunpack.c.h.b16 %v143
    %v568 = vunpack.c.l.b16 %v144
    %v569 = vunpack.c.h.b16 %v144
    %v570 = vunpack.c.l.b16 %v145
    %v571 = vunpack.c.h.b16 %v145
    %v572 = vunpack.c.l.b16 %v146
    %v573 = vunpack.c.h.b16 %v146
    %v574 = vunpack.c.l.b16 %v147
    %v575 = vunpack.c.h.b16 %v147
    %v576 = vunpack.c.l.b16 %v148
    %v577 = vunpack.c.h.b16 %v148
    %v578 = vunpack.c.l.b16 %v149
    %v579 = vunpack.c.h.b16 %v149
    %v580 = vunpack.c.l.b16 %v150
    %v581 = vunpack.c.h.b16 %v150
    %v582 = vunpack.c.l.b16 %v151
    %v583 = vunpack.c.h.b16 %v151
    %v584 = vunpack.c.l.b16 %v152
    %v585 = vunpack.c.h.b16 %v152
    %v586 = vunpack.c.l.b16 %v153
    %v587 = vunpack.c.h.b16 %v153
    %v588 = vunpack.c.l.b16 %v154
    %v589 = vunpack.c.h.b16 %v154
    %v590 = vunpack.c.l.b16 %v155
    %v591 = vunpack.c.h.b16 %v155
    %v592 = vunpack.c.l.b16 %v156
    %v593 = vunpack.c.h.b16 %v156
    %v594 = vunpack.c.l.b16 %v157
    %v595 = vunpack.c.h.b16 %v157
    %v596 = vunpack.c.l.b16 %v158
    %v597 = vunpack.c.h.b16 %v158
    %v598 = vunpack.c.l.b16 %v159
    %v599 = vunpack.c.h.b16 %v159
    %v600 = vunpack.c.l.b16 %v160
    %v601 = vunpack.c.h.b16 %v160
    %v602 = vunpack.c.l.b16 %v161
    %v603 = vunpack.c.h.b16 %v161
    %v604 = vunpack.c.l.b16 %v162
    %v605 = vunpack.c.h.b16 %v162
    %v606 = vunpack.c.l.b16 %v163
    %v607 = vunpack.c.h.b16 %v163
    %v608 = vunpack.c.l.b16 %v164
    %v609 = vunpack.c.h.b16 %v164
    %v610 = vunpack.c.l.b16 %v165
    %v611 = vunpack.c.h.b16 %v165
    %v612 = vunpack.c.l.b16 %v166
    %v613 = vunpack.c.h.b16 %v166
    %v614 = vunpack.c.l.b16 %v167
    %v615 = vunpack.c.h.b16 %v167
    %v616 = vunpack.c.l.b16 %v168
    %v617 = vunpack.c.h.b16 %v168
    %v618 = vunpack.c.l.b16 %v169
    %v619 = vunpack.c.h.b16 %v169
    %v620 = vunpack.c.l.b16 %v170
    %v621 = vunpack.c.h.b16 %v170
    %v622 = vunpack.c.l.b16 %v171
    %v623 = vunpack.c.h.b16 %v171
    %v624 = vunpack.c.l.b16 %v172
    %v625 = vunpack.c.h.b16 %v172
    %v626 = vunpack.c.l.b16 %v173
    %v627 = vunpack.c.h.b16 %v173
    %v628 = vunpack.c.l.b16 %v174
    %v629 = vunpack.c.h.b16 %v174
    %v630 = vunpack.c.l.b16 %v175
    %v631 = vunpack.c.h.b16 %v175
    %v632 = vunpack.c.l.b16 %v176
    %v633 = vunpack.c.h.b16 %v176
    %v634 = vunpack.c.l.b16 %v177
    %v635 = vunpack.c.h.b16 %v177
    %v636 = vunpack.c.l.b16 %v178
    %v637 = vunpack.c.h.b16 %v178
    %v638 = vunpack.c.l.b16 %v179
    %v639 = vunpack.c.h.b16 %v179
    %v640 = vunpack.c.l.b16 %v180
    %v641 = vunpack.c.h.b16 %v180
    %v642 = vunpack.c.l.b16 %v181
    %v643 = vunpack.c.h.b16 %v181
    %v644 = vunpack.c.l.b16 %v182
    %v645 = vunpack.c.h.b16 %v182
    %v646 = vunpack.c.l.b16 %v183
    %v647 = vunpack.c.h.b16 %v183
    %v648 = vunpack.c.l.b16 %v184
    %v649 = vunpack.c.h.b16 %v184
    %v650 = vunpack.c.l.b16 %v185
    %v651 = vunpack.c.h.b16 %v185
    %v652 = vunpack.c.l.b16 %v186
    %v653 = vunpack.c.h.b16 %v186
    %v654 = vunpack.c.l.b16 %v187
    %v655 = vunpack.c.h.b16 %v187
    %v656 = vunpack.c.l.b16 %v188
    %v657 = vunpack.c.h.b16 %v188
    %v658 = vunpack.c.l.b16 %v189
    %v659 = vunpack.c.h.b16 %v189
    %v660 = vunpack.c.l.b16 %v190
    %v661 = vunpack.c.h.b16 %v190
    %v662 = vunpack.c.l.b16 %v191
    %v663 = vunpack.c.h.b16 %v191
    %v664 = vunpack.c.l.b16 %v192
    %v665 = vunpack.c.h.b16 %v192
    %v666 = vunpack.c.l.b16 %v193
    %v667 = vunpack.c.h.b16 %v193
    %v668 = vunpack.c.l.b16 %v194
    %v669 = vunpack.c.h.b16 %v194
    %v670 = vunpack.c.l.b16 %v195
    %v671 = vunpack.c.h.b16 %v195
    %v672 = vunpack.c.l.b16 %v196
    %v673 = vunpack.c.h.b16 %v196
    %v674 = vunpack.c.l.b16 %v197
    %v675 = vunpack.c.h.b16 %v197
    %v676 = vunpack.c.l.b16 %v198
    %v677 = vunpack.c.h.b16 %v198
    %v678 = vunpack.c.l.b16 %v199
    %v679 = vunpack.c.h.b16 %v199
    %v680 = vunpack.c.l.b16 %v200
    %v681 = vunpack.c.h.b16 %v200
    %v682 = vunpack.c.l.b16 %v201
    %v683 = vunpack.c.h.b16 %v201
    %v684 = vunpack.c.l.b16 %v202
    %v685 = vunpack.c.h.b16 %v202
    %v686 = vunpack.c.l.b16 %v203
    %v687 = vunpack.c.h.b16 %v203
    %v688 = vunpack.c.l.b16 %v204
    %v689 = vunpack.c.h.b16 %v204
    %v690 = vunpack.c.l.b16 %v205
    %v691 = vunpack.c.h.b16 %v205
    %v692 = vunpack.c.l.b16 %v206
    %v693 = vunpack.c.h.b16 %v206
    %v694 = vunpack.c.l.b16 %v207
    %v695 = vunpack.c.h.b16 %v207
    %v696 = vunpack.c.l.b16 %v208
    %v697 = vunpack.c.h.b16 %v208
    %v698 = vunpack.c.l.b16 %v209
    %v699 = vunpack.c.h.b16 %v209
    %v700 = vunpack.c.l.b16 %v210
    %v701 = vunpack.c.h.b16 %v210
    %v702 = vunpack.c.l.b16 %v211
    %v703 = vunpack.c.h.b16 %v211
    %v704 = vunpack.c.l.b16 %v212
    %v705 = vunpack.c.h.b16 %v212
    %v706 = vunpack.c.l.b16 %v213
    %v707 = vunpack.c.h.b16 %v213
    %v708 = vunpack.c.l.b16 %v214
    %v709 = vunpack.c.h.b16 %v214
    %v710 = vunpack.c.l.b16 %v215
    %v711 = vunpack.c.h.b16 %v215
    %v712 = vunpack.c.l.b16 %v216
    %v713 = vunpack.c.h.b16 %v216
    %v714 = vunpack.c.l.b16 %v217
    %v715 = vunpack.c.h.b16 %v217
    %v716 = vunpack.c.l.b16 %v218
    %v717 = vunpack.c.h.b16 %v218
    %v718 = vunpack.c.l.b16 %v219
    %v719 = vunpack.c.h.b16 %v219
    %v720 = vunpack.c.l.b16 %v220
    %v721 = vunpack.c.h.b16 %v220
    %v722 = vunpack.c.l.b16 %v221
    %v723 = vunpack.c.h.b16 %v221
    %v724 = vunpack.c.l.b16 %v222
    %v725 = vunpack.c.h.b16 %v222
    %v726 = vunpack.c.l.b16 %v223
    %v727 = vunpack.c.h.b16 %v223
    %v728 = vunpack.c.l.b16 %v224
    %v729 = vunpack.c.h.b16 %v224
    %v730 = vunpack.c.l.b16 %v225
    %v731 = vunpack.c.h.b16 %v225
    %v732 = vunpack.c.l.b16 %v226
    %v733 = vunpack.c.h.b16 %v226
    %v734 = vunpack.c.l.b16 %v227
    %v735 = vunpack.c.h.b16 %v227
    %v736 = vunpack.c.l.b16 %v228
    %v737 = vunpack.c.h.b16 %v228
    %v738 = vunpack.c.l.b16 %v229
    %v739 = vunpack.c.h.b16 %v229
    %v740 = vunpack.c.l.b16 %v230
    %v741 = vunpack.c.h.b16 %v230
    %v742 = vunpack.c.l.b16 %v231
    %v743 = vunpack.c.h.b16 %v231
    %v744 = vunpack.c.l.b16 %v232
    %v745 = vunpack.c.h.b16 %v232
    %v746 = vunpack.c.l.b16 %v233
    %v747 = vunpack.c.h.b16 %v233
    %v748 = vunpack.c.l.b16 %v234
    %v749 = vunpack.c.h.b16 %v234
    %v750 = vunpack.c.l.b16 %v235
    %v751 = vunpack.c.h.b16 %v235
    %v752 = vunpack.c.l.b16 %v236
    %v753 = vunpack.c.h.b16 %v236
    %v754 = vunpack.c.l.b16 %v237
    %v755 = vunpack.c.h.b16 %v237
    %v756 = vunpack.c.l.b16 %v238
    %v757 = vunpack.c.h.b16 %v238
    %v758 = vunpack.c.l.b16 %v239
    %v759 = vunpack.c.h.b16 %v239
    %v760 = vunpack.c.l.b16 %v240
    %v761 = vunpack.c.h.b16 %v240
    %v762 = vunpack.c.l.b16 %v241
    %v763 = vunpack.c.h.b16 %v241
    %v764 = vunpack.c.l.b16 %v242
    %v765 = vunpack.c.h.b16 %v242
    %v766 = vunpack.c.l.b16 %v243
    %v767 = vunpack.c.h.b16 %v243
    %v768 = vunpack.c.l.b16 %v244
    %v769 = vunpack.c.h.b16 %v244
    %v770 = vunpack.c.l.b16 %v245
    %v771 = vunpack.c.h.b16 %v245
    %v772 = vunpack.c.l.b16 %v246
    %v773 = vunpack.c.h.b16 %v246
    %v774 = vunpack.c.l.b16 %v247
    %v775 = vunpack.c.h.b16 %v247
    %v776 = vunpack.c.l.b16 %v248
    %v777 = vunpack.c.h.b16 %v248
    %v778 = vunpack.c.l.b16 %v249
    %v779 = vunpack.c.h.b16 %v249
    %v780 = vunpack.c.l.b16 %v250
    %v781 = vunpack.c.h.b16 %v250
    %v782 = vunpack.c.l.b16 %v251
    %v783 = vunpack.c.h.b16 %v251
    %v784 = vunpack.c.l.b16 %v252
    %v785 = vunpack.c.h.b16 %v252
    %v786 = vunpack.c.l.b16 %v253
    %v787 = vunpack.c.h.b16 %v253
    %v788 = vunpack.c.l.b16 %v254
    %v789 = vunpack.c.h.b16 %v254
    %v790 = vunpack.c.l.b16 %v255
    %v791 = vunpack.c.h.b16 %v255
    %v792 = vunpack.c.l.b16 %v256
    %v793 = vunpack.c.h.b16 %v256
    %v794 = vunpack.c.l.b16 %v257
    %v795 = vunpack.c.h.b16 %v257
    %v796 = vunpack.c.l.b16 %v258
    %v797 = vunpack.c.h.b16 %v258
    %v798 = vunpack.c.l.b16 %v259
    %v799 = vunpack.c.h.b16 %v259
    %v800 = vunpack.c.l.b16 %v260
    %v801 = vunpack.c.h.b16 %v260
    %v802 = vunpack.c.l.b16 %v261
    %v803 = vunpack.c.h.b16 %v261
    %v804 = vunpack.c.l.b16 %v262
    %v805 = vunpack.c.h.b16 %v262
    %v806 = vunpack.c.l.b16 %v263
    %v807 = vunpack.c.h.b16 %v263
    %v808 = vunpack.c.l.b16 %v264
    %v809 = vunpack.c.h.b16 %v264
    %v810 = vunpack.c.l.b16 %v265
    %v811 = vunpack.c.h.b16 %v265
    %v812 = vunpack.c.l.b16 %v266
    %v813 = vunpack.c.h.b16 %v266
    %v814 = vunpack.c.l.b16 %v267
    %v815 = vunpack.c.h.b16 %v267
    %v816 = vunpack.c.l.b16 %v268
    %v817 = vunpack.c.h.b16 %v268
    %v818 = vunpack.c.l.b16 %v269
    %v819 = vunpack.c.h.b16 %v269
    %v820 = vunpack.c.l.b16 %v270
    %v821 = vunpack.c.h.b16 %v270
    %v822 = vunpack.c.l.b16 %v271
    %v823 = vunpack.c.h.b16 %v271
    %v824 = vunpack.c.l.b16 %v272
    %v825 = vunpack.c.h.b16 %v272
    %v826 = vunpack.c.l.b16 %v273
    %v827 = vunpack.c.h.b16 %v273
    %v828 = vunpack.c.l.b16 %v274
    %v829 = vunpack.c.h.b16 %v274
    %v830 = vunpack.c.l.b16 %v275
    %v831 = vunpack.c.h.b16 %v275
    %v832 = vunpack.c.l.b16 %v276
    %v833 = vunpack.c.h.b16 %v276
    %v834 = vunpack.c.l.b16 %v277
    %v835 = vunpack.c.h.b16 %v277
    %v836 = vunpack.c.l.b16 %v278
    %v837 = vunpack.c.h.b16 %v278
    %v838 = vunpack.c.l.b16 %v279
    %v839 = vunpack.c.h.b16 %v279
    %v840 = vunpack.c.l.b16 %v280
    %v841 = vunpack.c.h.b16 %v280
    %v842 = vunpack.c.l.b16 %v281
    %v843 = vunpack.c.h.b16 %v281
    %v844 = vunpack.c.l.b16 %v282
    %v845 = vunpack.c.h.b16 %v282
    %v846 = vunpack.c.l.b16 %v283
    %v847 = vunpack.c.h.b16 %v283
    %v848 = vunpack.c.l.b16 %v284
    %v849 = vunpack.c.h.b16 %v284
    %v850 = vunpack.c.l.b16 %v285
    %v851 = vunpack.c.h.b16 %v285
    %v852 = vunpack.c.l.b16 %v286
    %v853 = vunpack.c.h.b16 %v286
    %v854 = vunpack.c.l.b16 %v287
    %v855 = vunpack.c.h.b16 %v287
    %v856 = vunpack.c.l.b16 %v288
    %v857 = vunpack.c.h.b16 %v288
    %v858 = vunpack.c.l.b16 %v289
    %v859 = vunpack.c.h.b16 %v289
    %v860 = vunpack.c.l.b16 %v290
    %v861 = vunpack.c.h.b16 %v290
    %v862 = vunpack.c.l.b16 %v291
    %v863 = vunpack.c.h.b16 %v291
    %v864 = vunpack.c.l.b16 %v292
    %v865 = vunpack.c.h.b16 %v292
    %v866 = vunpack.c.l.b16 %v293
    %v867 = vunpack.c.h.b16 %v293
    %v868 = vunpack.c.l.b16 %v294
    %v869 = vunpack.c.h.b16 %v294
    %v870 = vunpack.c.l.b16 %v295
    %v871 = vunpack.c.h.b16 %v295
    %v872 = vunpack.c.l.b16 %v296
    %v873 = vunpack.c.h.b16 %v296
    %v874 = vunpack.c.l.b16 %v297
    %v875 = vunpack.c.h.b16 %v297
    %v876 = vunpack.c.l.b16 %v298
    %v877 = vunpack.c.h.b16 %v298
    %v878 = vunpack.c.l.b16 %v299
    %v879 = vunpack.c.h.b16 %v299
    %v880 = vunpack.c.l.b16 %v300
    %v881 = vunpack.c.h.b16 %v300
    %v882 = vunpack.c.l.b16 %v301
    %v883 = vunpack.c.h.b16 %v301
    %v884 = vunpack.c.l.b16 %v302
    %v885 = vunpack.c.h.b16 %v302
    %v886 = vunpack.c.l.b16 %v303
    %v887 = vunpack.c.h.b16 %v303
    %v888 = vunpack.c.l.b16 %v304
    %v889 = vunpack.c.h.b16 %v304
    %v890 = vunpack.c.l.b16 %v305
    %v891 = vunpack.c.h.b16 %v305
    %v892 = vunpack.c.l.b16 %v306
    %v893 = vunpack.c.h.b16 %v306
    %v894 = vunpack.c.l.b16 %v307
    %v895 = vunpack.c.h.b16 %v307
    %v896 = vunpack.c.l.b16 %v308
    %v897 = vunpack.c.h.b16 %v308
    %v898 = vunpack.c.l.b16 %v309
    %v899 = vunpack.c.h.b16 %v309
    %v900 = vunpack.c.l.b16 %v310
    %v901 = vunpack.c.h.b16 %v310
    %v902 = vunpack.c.l.b16 %v311
    %v903 = vunpack.c.h.b16 %v311
    %v904 = vunpack.c.l.b16 %v312
    %v905 = vunpack.c.h.b16 %v312
    %v906 = vunpack.c.l.b16 %v313
    %v907 = vunpack.c.h.b16 %v313
    %v908 = vunpack.c.l.b16 %v314
    %v909 = vunpack.c.h.b16 %v314
    %v910 = vunpack.c.l.b16 %v315
    %v911 = vunpack.c.h.b16 %v315
    %v912 = vunpack.c.l.b16 %v316
    %v913 = vunpack.c.h.b16 %v316
    %v914 = vunpack.c.l.b16 %v317
    %v915 = vunpack.c.h.b16 %v317
    %v916 = vunpack.c.l.b16 %v318
    %v917 = vunpack.c.h.b16 %v318
    %v918 = vunpack.c.l.b16 %v319
    %v919 = vunpack.c.h.b16 %v319
    %v920 = vunpack.c.l.b16 %v320
    %v921 = vunpack.c.h.b16 %v320
    %v922 = vunpack.c.l.b16 %v321
    %v923 = vunpack.c.h.b16 %v321
    %v924 = vunpack.c.l.b16 %v322
    %v925 = vunpack.c.h.b16 %v322
    %v926 = vunpack.c.l.b16 %v323
    %v927 = vunpack.c.h.b16 %v323
    %v928 = vunpack.c.l.b16 %v324
    %v929 = vunpack.c.h.b16 %v324
    %v930 = vunpack.c.l.b16 %v325
    %v931 = vunpack.c.h.b16 %v325
    %v932 = vunpack.c.l.b16 %v326
    %v933 = vunpack.c.h.b16 %v326
    %v934 = vunpack.c.l.b16 %v327
    %v935 = vunpack.c.h.b16 %v327
    %v936 = vunpack.c.l.b16 %v328
    %v937 = vunpack.c.h.b16 %v328
    %v938 = vunpack.c.l.b16 %v329
    %v939 = vunpack.c.h.b16 %v329
    %v940 = vpack.c.b16 %v552, %v548
    %v941 = vpack.c.b16 %v553, %v549
    %v942 = vpack.c.b16 %v554, %v550
    %v943 = vpack.c.b16 %v555, %v551
    %v944 = vpack.c.b16 %v560, %v556
    %v945 = vpack.c.b16 %v561, %v557
    %v946 = vpack.c.b16 %v562, %v558
    %v947 = vpack.c.b16 %v563, %v559
    %v948 = vpack.c.b16 %v568, %v564
    %v949 = vpack.c.b16 %v569, %v565
    %v950 = vpack.c.b16 %v570, %v566
    %v951 = vpack.c.b16 %v571, %v567
    %v952 = vpack.c.b16 %v576, %v572
    %v953 = vpack.c.b16 %v577, %v573
    %v954 = vpack.c.b16 %v578, %v574
    %v955 = vpack.c.b16 %v579, %v575
    %v956 = vpack.c.b16 %v584, %v580
    %v957 = vpack.c.b16 %v585, %v581
    %v958 = vpack.c.b16 %v586, %v582
    %v959 = vpack.c.b16 %v587, %v583
    %v960 = vpack.c.b16 %v592, %v588
    %v961 = vpack.c.b16 %v593, %v589
    %v962 = vpack.c.b16 %v594, %v590
    %v963 = vpack.c.b16 %v595, %v591
    %v964 = vpack.c.b16 %v600, %v596
    %v965 = vpack.c.b16 %v601, %v597
    %v966 = vpack.c.b16 %v602, %v598
    %v967 = vpack.c.b16 %v603, %v599
    %v968 = vpack.c.b16 %v608, %v604
    %v969 = vpack.c.b16 %v609, %v605
    %v970 = vpack.c.b16 %v610, %v606
    %v971 = vpack.c.b16 %v611, %v607
    %v972 = vpack.c.b16 %v616, %v612
    %v973 = vpack.c.b16 %v617, %v613
    %v974 = vpack.c.b16 %v618, %v614
    %v975 = vpack.c.b16 %v619, %v615
    %v976 = vpack.c.b16 %v624, %v620
    %v977 = vpack.c.b16 %v625, %v621
    %v978 = vpack.c.b16 %v626, %v622
    %v979 = vpack.c.b16 %v627, %v623
    %v980 = vpack.c.b16 %v632, %v628
    %v981 = vpack.c.b16 %v633, %v629
    %v982 = vpack.c.b16 %v634, %v630
    %v983 = vpack.c.b16 %v635, %v631
    %v984 = vpack.c.b16 %v640, %v636
    %v985 = vpack.c.b16 %v641, %v637
    %v986 = vpack.c.b16 %v642, %v638
    %v987 = vpack.c.b16 %v643, %v639
    %v988 = vpack.c.b16 %v648, %v644
    %v989 = vpack.c.b16 %v649, %v645
    %v990 = vpack.c.b16 %v650, %v646
    %v991 = vpack.c.b16 %v651, %v647
    %v992 = vpack.c.b16 %v656, %v652
    %v993 = vpack.c.b16 %v657, %v653
    %v994 = vpack.c.b16 %v658, %v654
    %v995 = vpack.c.b16 %v659, %v655
    %v996 = vpack.c.b16 %v664, %v660
    %v997 = vpack.c.b16 %v665, %v661
    %v998 = vpack.c.b16 %v666, %v662
    %v999 = vpack.c.b16 %v667, %v663
    %v1000 = vpack.c.b16 %v672, %v668
    %v1001 = vpack.c.b16 %v673, %v669
    %v1002 = vpack.c.b16 %v674, %v670
    %v1003 = vpack.c.b16 %v675, %v671
    %v1004 = vpack.c.b16 %v680, %v676
    %v1005 = vpack.c.b16 %v681, %v677
    %v1006 = vpack.c.b16 %v682, %v678
    %v1007 = vpack.c.b16 %v683, %v679
    %v1008 = vpack.c.b16 %v688, %v684
    %v1009 = vpack.c.b16 %v689, %v685
    %v1010 = vpack.c.b16 %v690, %v686
    %v1011 = vpack.c.b16 %v691, %v687
    %v1012 = vpack.c.b16 %v696, %v692
    %v1013 = vpack.c.b16 %v697, %v693
    %v1014 = vpack.c.b16 %v698, %v694
    %v1015 = vpack.c.b16 %v699, %v695
    %v1016 = vpack.c.b16 %v704, %v700
    %v1017 = vpack.c.b16 %v705, %v701
    %v1018 = vpack.c.b16 %v706, %v702
    %v1019 = vpack.c.b16 %v707, %v703
    %v1020 = vpack.c.b16 %v712, %v708
    %v1021 = vpack.c.b16 %v713, %v709
    %v1022 = vpack.c.b16 %v714, %v710
    %v1023 = vpack.c.b16 %v715, %v711
    %v1024 = vpack.c.b16 %v720, %v716
    %v1025 = vpack.c.b16 %v721, %v717
    %v1026 = vpack.c.b16 %v722, %v718
    %v1027 = vpack.c.b16 %v723, %v719
    %v1028 = vpack.c.b16 %v728, %v724
    %v1029 = vpack.c.b16 %v729, %v725
    %v1030 = vpack.c.b16 %v730, %v726
    %v1031 = vpack.c.b16 %v731, %v727
    %v1032 = vpack.c.b16 %v736, %v732
    %v1033 = vpack.c.b16 %v737, %v733
    %v1034 = vpack.c.b16 %v738, %v734
    %v1035 = vpack.c.b16 %v739, %v735
    %v1036 = vpack.c.b16 %v744, %v740
    %v1037 = vpack.c.b16 %v745, %v741
    %v1038 = vpack.c.b16 %v746, %v742
    %v1039 = vpack.c.b16 %v747, %v743
    %v1040 = vpack.c.b16 %v752, %v748
    %v1041 = vpack.c.b16 %v753, %v749
    %v1042 = vpack.c.b16 %v754, %v750
    %v1043 = vpack.c.b16 %v755, %v751
    %v1044 = vpack.c.b16 %v760, %v756
    %v1045 = vpack.c.b16 %v761, %v757
    %v1046 = vpack.c.b16 %v762, %v758
    %v1047 = vpack.c.b16 %v763, %v759
    %v1048 = vpack.c.b16 %v768, %v764
    %v1049 = vpack.c.b16 %v769, %v765
    %v1050 = vpack.c.b16 %v770, %v766
    %v1051 = vpack.c.b16 %v771, %v767
    %v1052 = vpack.c.b16 %v776, %v772
    %v1053 = vpack.c.b16 %v777, %v773
    %v1054 = vpack.c.b16 %v778, %v774
    %v1055 = vpack.c.b16 %v779, %v775
    %v1056 = vpack.c.b16 %v784, %v780
    %v1057 = vpack.c.b16 %v785, %v781
    %v1058 = vpack.c.b16 %v786, %v782
    %v1059 = vpack.c.b16 %v787, %v783
    %v1060 = vpack.c.b16 %v792, %v788
    %v1061 = vpack.c.b16 %v793, %v789
    %v1062 = vpack.c.b16 %v794, %v790
    %v1063 = vpack.c.b16 %v795, %v791
    %v1064 = vpack.c.b16 %v800, %v796
    %v1065 = vpack.c.b16 %v801, %v797
    %v1066 = vpack.c.b16 %v802, %v798
    %v1067 = vpack.c.b16 %v803, %v799
    %v1068 = vpack.c.b16 %v808, %v804
    %v1069 = vpack.c.b16 %v809, %v805
    %v1070 = vpack.c.b16 %v810, %v806
    %v1071 = vpack.c.b16 %v811, %v807
    %v1072 = vpack.c.b16 %v816, %v812
    %v1073 = vpack.c.b16 %v817, %v813
    %v1074 = vpack.c.b16 %v818, %v814
    %v1075 = vpack.c.b16 %v819, %v815
    %v1076 = vpack.c.b16 %v824, %v820
    %v1077 = vpack.c.b16 %v825, %v821
    %v1078 = vpack.c.b16 %v826, %v822
    %v1079 = vpack.c.b16 %v827, %v823
    %v1080 = vpack.c.b16 %v832, %v828
    %v1081 = vpack.c.b16 %v833, %v829
    %v1082 = vpack.c.b16 %v834, %v830
    %v1083 = vpack.c.b16 %v835, %v831
    %v1084 = vpack.c.b16 %v840, %v836
    %v1085 = vpack.c.b16 %v841, %v837
    %v1086 = vpack.c.b16 %v842, %v838
    %v1087 = vpack.c.b16 %v843, %v839
    %v1088 = vpack.c.b16 %v848, %v844
    %v1089 = vpack.c.b16 %v849, %v845
    %v1090 = vpack.c.b16 %v850, %v846
    %v1091 = vpack.c.b16 %v851, %v847
    %v1092 = vpack.c.b16 %v856, %v852
    %v1093 = vpack.c.b16 %v857, %v853
    %v1094 = vpack.c.b16 %v858, %v854
    %v1095 = vpack.c.b16 %v859, %v855
    %v1096 = vpack.c.b16 %v864, %v860
    %v1097 = vpack.c.b16 %v865, %v861
    %v1098 = vpack.c.b16 %v866, %v862
    %v1099 = vpack.c.b16 %v867, %v863
    %v1100 = vpack.c.b16 %v872, %v868
    %v1101 = vpack.c.b16 %v873, %v869
    %v1102 = vpack.c.b16 %v874, %v870
    %v1103 = vpack.c.b16 %v875, %v871
    %v1104 = vpack.c.b16 %v880, %v876
    %v1105 = vpack.c.b16 %v881, %v877
    %v1106 = vpack.c.b16 %v882, %v878
    %v1107 = vpack.c.b16 %v883, %v879
    %v1108 = vpack.c.b16 %v888, %v884
    %v1109 = vpack.c.b16 %v889, %v885
    %v1110 = vpack.c.b16 %v890, %v886
    %v1111 = vpack.c.b16 %v891, %v887
    %v1112 = vpack.c.b16 %v896, %v892
    %v1113 = vpack.c.b16 %v897, %v893
    %v1114 = vpack.c.b16 %v898, %v894
    %v1115 = vpack.c.b16 %v899, %v895
    %v1116 = vpack.c.b16 %v904, %v900
    %v1117 = vpack.c.b16 %v905, %v901
    %v1118 = vpack.c.b16 %v906, %v902
    %v1119 = vpack.c.b16 %v907, %v903
    %v1120 = vpack.c.b16 %v912, %v908
    %v1121 = vpack.c.b16 %v913, %v909
    %v1122 = vpack.c.b16 %v914, %v910
    %v1123 = vpack.c.b16 %v915, %v911
    %v1124 = vpack.c.b16 %v920, %v916
    %v1125 = vpack.c.b16 %v921, %v917
    %v1126 = vpack.c.b16 %v922, %v918
    %v1127 = vpack.c.b16 %v923, %v919
    %v1128 = vpack.c.b16 %v928, %v924
    %v1129 = vpack.c.b16 %v929, %v925
    %v1130 = vpack.c.b16 %v930, %v926
    %v1131 = vpack.c.b16 %v931, %v927
    %v1132 = vpack.c.b16 %v936, %v932
    %v1133 = vpack.c.b16 %v937, %v933
    %v1134 = vpack.c.b16 %v938, %v934
    %v1135 = vpack.c.b16 %v939, %v935
    %vm1332 = vcmask 130048
    %v1334 = vsel %vm1332, %v133, 0
    %1336 = vmatprep.subr.bf16.mxu0 %v941
    %1337 = vmatpush1.bf16.msra.mxu0 %v940
    %1338 = vmatprep.subr.bf16.mxu0 %v945
    %1339 = vmatpush1.bf16.msra.mxu0 %v944
    %1340 = vmatprep.subr.bf16.mxu0 %v949
    %1341 = vmatpush1.bf16.msra.mxu0 %v948
    %1342 = vmatprep.subr.bf16.mxu0 %v953
    %1343 = vmatpush1.bf16.msra.mxu0 %v952
    %1344 = vmatprep.subr.bf16.mxu0 %v957
    %1345 = vmatpush1.bf16.msra.mxu0 %v956
    %1346 = vmatprep.subr.bf16.mxu0 %v961
    %1347 = vmatpush1.bf16.msra.mxu0 %v960
    %1348 = vmatprep.subr.bf16.mxu0 %v965
    %1349 = vmatpush1.bf16.msra.mxu0 %v964
    %1350 = vmatprep.subr.bf16.mxu0 %v969
    %1351 = vmatpush1.bf16.msra.mxu0 %v968
    %1352 = vmatprep.subr.bf16.mxu0 %v973
    %1353 = vmatpush1.bf16.msra.mxu0 %v972
    %1354 = vmatprep.subr.bf16.mxu0 %v977
    %1355 = vmatpush1.bf16.msra.mxu0 %v976
    %1356 = vmatprep.subr.bf16.mxu0 %v981
    %1357 = vmatpush1.bf16.msra.mxu0 %v980
    %1358 = vmatprep.subr.bf16.mxu0 %v985
    %1359 = vmatpush1.bf16.msra.mxu0 %v984
    %1360 = vmatprep.subr.bf16.mxu0 %v989
    %1361 = vmatpush1.bf16.msra.mxu0 %v988
    %1362 = vmatprep.subr.bf16.mxu0 %v993
    %1363 = vmatpush1.bf16.msra.mxu0 %v992
    %1364 = vmatprep.subr.bf16.mxu0 %v997
    %1365 = vmatpush1.bf16.msra.mxu0 %v996
    %1366 = vmatprep.subr.bf16.mxu0 %v1001
    %1367 = vmatpush1.bf16.msra.mxu0 %v1000
    %1368 = vmatprep.mubr.bf16.mxu0 %v128
    %1369 = vmatmul.mubr.bf16.gmra.mrb[0].mxu0 %v127
    %v1370 = vpop.f32.mrb[0].mxu0
    %v1371 = vadd.f32 %v335, %v1370
    %v1372 = vpop.f32.mrb[0].mxu0
    %v1373 = vadd.f32 %v339, %v1372
    %v1374 = vpop.f32.mrb[0].mxu0
    %v1375 = vpop.f32.mrb[0].mxu0
    %1376 = vdwg.mxu0
    %1377 = vmatprep.subr.bf16.mxu0 %v1005
    %1378 = vmatpush1.bf16.msra.mxu0 %v1004
    %1379 = vmatprep.subr.bf16.mxu0 %v1009
    %1380 = vmatpush1.bf16.msra.mxu0 %v1008
    %1381 = vmatprep.subr.bf16.mxu0 %v1013
    %1382 = vmatpush1.bf16.msra.mxu0 %v1012
    %1383 = vmatprep.subr.bf16.mxu0 %v1017
    %1384 = vmatpush1.bf16.msra.mxu0 %v1016
    %1385 = vmatprep.subr.bf16.mxu0 %v1021
    %1386 = vmatpush1.bf16.msra.mxu0 %v1020
    %1387 = vmatprep.subr.bf16.mxu0 %v1025
    %1388 = vmatpush1.bf16.msra.mxu0 %v1024
    %1389 = vmatprep.subr.bf16.mxu0 %v1029
    %1390 = vmatpush1.bf16.msra.mxu0 %v1028
    %1391 = vmatprep.subr.bf16.mxu0 %v1033
    %1392 = vmatpush1.bf16.msra.mxu0 %v1032
    %1393 = vmatprep.subr.bf16.mxu0 %v1037
    %1394 = vmatpush1.bf16.msra.mxu0 %v1036
    %1395 = vmatprep.subr.bf16.mxu0 %v1041
    %1396 = vmatpush1.bf16.msra.mxu0 %v1040
    %1397 = vmatprep.subr.bf16.mxu0 %v1045
    %1398 = vmatpush1.bf16.msra.mxu0 %v1044
    %1399 = vmatprep.subr.bf16.mxu0 %v1049
    %1400 = vmatpush1.bf16.msra.mxu0 %v1048
    %1401 = vmatprep.subr.bf16.mxu0 %v1053
    %1402 = vmatpush1.bf16.msra.mxu0 %v1052
    %1403 = vmatprep.subr.bf16.mxu0 %v1057
    %1404 = vmatpush1.bf16.msra.mxu0 %v1056
    %1405 = vmatprep.subr.bf16.mxu0 %v1061
    %1406 = vmatpush1.bf16.msra.mxu0 %v1060
    %1407 = vmatprep.subr.bf16.mxu0 %v1065
    %1408 = vmatpush1.bf16.msra.mxu0 %v1064
    %1409 = vmatprep.mubr.bf16.mxu0 %v130
    %1410 = vmatmul.mubr.bf16.gmra.mrb[0].mxu0 %v129
    %v1411 = vpop.f32.mrb[0].mxu0
    %v1412 = vadd.f32 %v1371, %v1411
    %v1413 = vpop.f32.mrb[0].mxu0
    %v1414 = vadd.f32 %v1373, %v1413
    %v1415 = vpop.f32.mrb[0].mxu0
    %v1416 = vpop.f32.mrb[0].mxu0
    %1417 = vdwg.mxu0
    %1418 = vmatprep.subr.bf16.mxu0 %v1069
    %1419 = vmatpush1.bf16.msra.mxu0 %v1068
    %1420 = vmatprep.subr.bf16.mxu0 %v1073
    %1421 = vmatpush1.bf16.msra.mxu0 %v1072
    %1422 = vmatprep.subr.bf16.mxu0 %v1077
    %1423 = vmatpush1.bf16.msra.mxu0 %v1076
    %1424 = vmatprep.subr.bf16.mxu0 %v1081
    %1425 = vmatpush1.bf16.msra.mxu0 %v1080
    %1426 = vmatprep.subr.bf16.mxu0 %v1085
    %1427 = vmatpush1.bf16.msra.mxu0 %v1084
    %1428 = vmatprep.subr.bf16.mxu0 %v1089
    %1429 = vmatpush1.bf16.msra.mxu0 %v1088
    %1430 = vmatprep.subr.bf16.mxu0 %v1093
    %1431 = vmatpush1.bf16.msra.mxu0 %v1092
    %1432 = vmatprep.subr.bf16.mxu0 %v1097
    %1433 = vmatpush1.bf16.msra.mxu0 %v1096
    %1434 = vmatprep.subr.bf16.mxu0 %v1101
    %1435 = vmatpush1.bf16.msra.mxu0 %v1100
    %1436 = vmatprep.subr.bf16.mxu0 %v1105
    %1437 = vmatpush1.bf16.msra.mxu0 %v1104
    %1438 = vmatprep.subr.bf16.mxu0 %v1109
    %1439 = vmatpush1.bf16.msra.mxu0 %v1108
    %1440 = vmatprep.subr.bf16.mxu0 %v1113
    %1441 = vmatpush1.bf16.msra.mxu0 %v1112
    %1442 = vmatprep.subr.bf16.mxu0 %v1117
    %1443 = vmatpush1.bf16.msra.mxu0 %v1116
    %1444 = vmatprep.subr.bf16.mxu0 %v1121
    %1445 = vmatpush1.bf16.msra.mxu0 %v1120
    %1446 = vmatprep.subr.bf16.mxu0 %v1125
    %1447 = vmatpush1.bf16.msra.mxu0 %v1124
    %1448 = vmatprep.subr.bf16.mxu0 %v1129
    %1449 = vmatpush1.bf16.msra.mxu0 %v1128
    %1450 = vmatprep.mubr.bf16.mxu0 %v132
    %1451 = vmatmul.mubr.bf16.gmra.mrb[0].mxu0 %v131
    %v1452 = vpop.f32.mrb[0].mxu0
    %v1453 = vadd.f32 %v1412, %v1452
    %v1454 = vpop.f32.mrb[0].mxu0
    %v1455 = vadd.f32 %v1414, %v1454
    %v1456 = vpop.f32.mrb[0].mxu0
    %v1457 = vpop.f32.mrb[0].mxu0
    %1458 = vdwg.mxu0
    %1459 = vmatprep.subr.bf16.mxu0 %v1133
    %1460 = vmatpush1.bf16.msra.mxu0 %v1132
    %1461 = vmatprep.subr.bf16.mxu0 0
    %1462 = vmatpush1.bf16.msra.mxu0 0
    %1463 = vmatprep.subr.bf16.mxu0 0
    %1464 = vmatpush1.bf16.msra.mxu0 0
    %1465 = vmatprep.subr.bf16.mxu0 0
    %1466 = vmatpush1.bf16.msra.mxu0 0
    %1467 = vmatprep.subr.bf16.mxu0 0
    %1468 = vmatpush1.bf16.msra.mxu0 0
    %1469 = vmatprep.subr.bf16.mxu0 0
    %1470 = vmatpush1.bf16.msra.mxu0 0
    %1471 = vmatprep.subr.bf16.mxu0 0
    %1472 = vmatpush1.bf16.msra.mxu0 0
    %1473 = vmatprep.subr.bf16.mxu0 0
    %1474 = vmatpush1.bf16.msra.mxu0 0
    %1475 = vmatprep.subr.bf16.mxu0 0
    %1476 = vmatpush1.bf16.msra.mxu0 0
    %1477 = vmatprep.subr.bf16.mxu0 0
    %1478 = vmatpush1.bf16.msra.mxu0 0
    %1479 = vmatprep.subr.bf16.mxu0 0
    %1480 = vmatpush1.bf16.msra.mxu0 0
    %1481 = vmatprep.subr.bf16.mxu0 0
    %1482 = vmatpush1.bf16.msra.mxu0 0
    %1483 = vmatprep.subr.bf16.mxu0 0
    %1484 = vmatpush1.bf16.msra.mxu0 0
    %1485 = vmatprep.subr.bf16.mxu0 0
    %1486 = vmatpush1.bf16.msra.mxu0 0
    %1487 = vmatprep.subr.bf16.mxu0 0
    %1488 = vmatpush1.bf16.msra.mxu0 0
    %1489 = vmatprep.subr.bf16.mxu0 0
    %1490 = vmatpush1.bf16.msra.mxu0 0
    %1491 = vmatprep.mubr.bf16.mxu0 0
    %1492 = vmatmul.mubr.bf16.gmra.mrb[0].mxu0 %v1334
    %v1493 = vpop.f32.mrb[0].mxu0
    %v1494 = vadd.f32 %v1453, %v1493
    %v1495 = vpop.f32.mrb[0].mxu0
    %v1496 = vadd.f32 %v1455, %v1495
    %v1497 = vpop.f32.mrb[0].mxu0
    %v1498 = vpop.f32.mrb[0].mxu0
    %1499 = vdwg.mxu0
    %1500 = vmatprep.subr.bf16.mxu0 %v943
    %1501 = vmatpush1.bf16.msra.mxu0 %v942
    %1502 = vmatprep.subr.bf16.mxu0 %v947
    %1503 = vmatpush1.bf16.msra.mxu0 %v946
    %1504 = vmatprep.subr.bf16.mxu0 %v951
    %1505 = vmatpush1.bf16.msra.mxu0 %v950
    %1506 = vmatprep.subr.bf16.mxu0 %v955
    %1507 = vmatpush1.bf16.msra.mxu0 %v954
    %1508 = vmatprep.subr.bf16.mxu0 %v959
    %1509 = vmatpush1.bf16.msra.mxu0 %v958
    %1510 = vmatprep.subr.bf16.mxu0 %v963
    %1511 = vmatpush1.bf16.msra.mxu0 %v962
    %1512 = vmatprep.subr.bf16.mxu0 %v967
    %1513 = vmatpush1.bf16.msra.mxu0 %v966
    %1514 = vmatprep.subr.bf16.mxu0 %v971
    %1515 = vmatpush1.bf16.msra.mxu0 %v970
    %1516 = vmatprep.subr.bf16.mxu0 %v975
    %1517 = vmatpush1.bf16.msra.mxu0 %v974
    %1518 = vmatprep.subr.bf16.mxu0 %v979
    %1519 = vmatpush1.bf16.msra.mxu0 %v978
    %1520 = vmatprep.subr.bf16.mxu0 %v983
    %1521 = vmatpush1.bf16.msra.mxu0 %v982
    %1522 = vmatprep.subr.bf16.mxu0 %v987
    %1523 = vmatpush1.bf16.msra.mxu0 %v986
    %1524 = vmatprep.subr.bf16.mxu0 %v991
    %1525 = vmatpush1.bf16.msra.mxu0 %v990
    %1526 = vmatprep.subr.bf16.mxu0 %v995
    %1527 = vmatpush1.bf16.msra.mxu0 %v994
    %1528 = vmatprep.subr.bf16.mxu0 %v999
    %1529 = vmatpush1.bf16.msra.mxu0 %v998
    %1530 = vmatprep.subr.bf16.mxu0 %v1003
    %1531 = vmatpush1.bf16.msra.mxu0 %v1002
    %1532 = vmatprep.mubr.bf16.mxu0 %v128
    %1533 = vmatmul.mubr.bf16.gmra.mrb[0].mxu0 %v127
    %v1534 = vpop.f32.mrb[0].mxu0
    %v1535 = vadd.f32 %v343, %v1534
    %v1536 = vpop.f32.mrb[0].mxu0
    %v1537 = vadd.f32 %v347, %v1536
    %v1538 = vpop.f32.mrb[0].mxu0
    %v1539 = vpop.f32.mrb[0].mxu0
    %1540 = vdwg.mxu0
    %1541 = vmatprep.subr.bf16.mxu0 %v1007
    %1542 = vmatpush1.bf16.msra.mxu0 %v1006
    %1543 = vmatprep.subr.bf16.mxu0 %v1011
    %1544 = vmatpush1.bf16.msra.mxu0 %v1010
    %1545 = vmatprep.subr.bf16.mxu0 %v1015
    %1546 = vmatpush1.bf16.msra.mxu0 %v1014
    %1547 = vmatprep.subr.bf16.mxu0 %v1019
    %1548 = vmatpush1.bf16.msra.mxu0 %v1018
    %1549 = vmatprep.subr.bf16.mxu0 %v1023
    %1550 = vmatpush1.bf16.msra.mxu0 %v1022
    %1551 = vmatprep.subr.bf16.mxu0 %v1027
    %1552 = vmatpush1.bf16.msra.mxu0 %v1026
    %1553 = vmatprep.subr.bf16.mxu0 %v1031
    %1554 = vmatpush1.bf16.msra.mxu0 %v1030
    %1555 = vmatprep.subr.bf16.mxu0 %v1035
    %1556 = vmatpush1.bf16.msra.mxu0 %v1034
    %1557 = vmatprep.subr.bf16.mxu0 %v1039
    %1558 = vmatpush1.bf16.msra.mxu0 %v1038
    %1559 = vmatprep.subr.bf16.mxu0 %v1043
    %1560 = vmatpush1.bf16.msra.mxu0 %v1042
    %1561 = vmatprep.subr.bf16.mxu0 %v1047
    %1562 = vmatpush1.bf16.msra.mxu0 %v1046
    %1563 = vmatprep.subr.bf16.mxu0 %v1051
    %1564 = vmatpush1.bf16.msra.mxu0 %v1050
    %1565 = vmatprep.subr.bf16.mxu0 %v1055
    %1566 = vmatpush1.bf16.msra.mxu0 %v1054
    %1567 = vmatprep.subr.bf16.mxu0 %v1059
    %1568 = vmatpush1.bf16.msra.mxu0 %v1058
    %1569 = vmatprep.subr.bf16.mxu0 %v1063
    %1570 = vmatpush1.bf16.msra.mxu0 %v1062
    %1571 = vmatprep.subr.bf16.mxu0 %v1067
    %1572 = vmatpush1.bf16.msra.mxu0 %v1066
    %1573 = vmatprep.mubr.bf16.mxu0 %v130
    %1574 = vmatmul.mubr.bf16.gmra.mrb[0].mxu0 %v129
    %v1575 = vpop.f32.mrb[0].mxu0
    %v1576 = vadd.f32 %v1535, %v1575
    %v1577 = vpop.f32.mrb[0].mxu0
    %v1578 = vadd.f32 %v1537, %v1577
    %v1579 = vpop.f32.mrb[0].mxu0
    %v1580 = vpop.f32.mrb[0].mxu0
    %1581 = vdwg.mxu0
    %1582 = vmatprep.subr.bf16.mxu0 %v1071
    %1583 = vmatpush1.bf16.msra.mxu0 %v1070
    %1584 = vmatprep.subr.bf16.mxu0 %v1075
    %1585 = vmatpush1.bf16.msra.mxu0 %v1074
    %1586 = vmatprep.subr.bf16.mxu0 %v1079
    %1587 = vmatpush1.bf16.msra.mxu0 %v1078
    %1588 = vmatprep.subr.bf16.mxu0 %v1083
    %1589 = vmatpush1.bf16.msra.mxu0 %v1082
    %1590 = vmatprep.subr.bf16.mxu0 %v1087
    %1591 = vmatpush1.bf16.msra.mxu0 %v1086
    %1592 = vmatprep.subr.bf16.mxu0 %v1091
    %1593 = vmatpush1.bf16.msra.mxu0 %v1090
    %1594 = vmatprep.subr.bf16.mxu0 %v1095
    %1595 = vmatpush1.bf16.msra.mxu0 %v1094
    %1596 = vmatprep.subr.bf16.mxu0 %v1099
    %1597 = vmatpush1.bf16.msra.mxu0 %v1098
    %1598 = vmatprep.subr.bf16.mxu0 %v1103
    %1599 = vmatpush1.bf16.msra.mxu0 %v1102
    %1600 = vmatprep.subr.bf16.mxu0 %v1107
    %1601 = vmatpush1.bf16.msra.mxu0 %v1106
    %1602 = vmatprep.subr.bf16.mxu0 %v1111
    %1603 = vmatpush1.bf16.msra.mxu0 %v1110
    %1604 = vmatprep.subr.bf16.mxu0 %v1115
    %1605 = vmatpush1.bf16.msra.mxu0 %v1114
    %1606 = vmatprep.subr.bf16.mxu0 %v1119
    %1607 = vmatpush1.bf16.msra.mxu0 %v1118
    %1608 = vmatprep.subr.bf16.mxu0 %v1123
    %1609 = vmatpush1.bf16.msra.mxu0 %v1122
    %1610 = vmatprep.subr.bf16.mxu0 %v1127
    %1611 = vmatpush1.bf16.msra.mxu0 %v1126
    %1612 = vmatprep.subr.bf16.mxu0 %v1131
    %1613 = vmatpush1.bf16.msra.mxu0 %v1130
    %1614 = vmatprep.mubr.bf16.mxu0 %v132
    %1615 = vmatmul.mubr.bf16.gmra.mrb[0].mxu0 %v131
    %v1616 = vpop.f32.mrb[0].mxu0
    %v1617 = vadd.f32 %v1576, %v1616
    %v1618 = vpop.f32.mrb[0].mxu0
    %v1619 = vadd.f32 %v1578, %v1618
    %v1620 = vpop.f32.mrb[0].mxu0
    %v1621 = vpop.f32.mrb[0].mxu0
    %1622 = vdwg.mxu0
    %1623 = vmatprep.subr.bf16.mxu0 %v1135
    %1624 = vmatpush1.bf16.msra.mxu0 %v1134
    %1625 = vmatprep.subr.bf16.mxu0 0
    %1626 = vmatpush1.bf16.msra.mxu0 0
    %1627 = vmatprep.subr.bf16.mxu0 0
    %1628 = vmatpush1.bf16.msra.mxu0 0
    %1629 = vmatprep.subr.bf16.mxu0 0
    %1630 = vmatpush1.bf16.msra.mxu0 0
    %1631 = vmatprep.subr.bf16.mxu0 0
    %1632 = vmatpush1.bf16.msra.mxu0 0
    %1633 = vmatprep.subr.bf16.mxu0 0
    %1634 = vmatpush1.bf16.msra.mxu0 0
    %1635 = vmatprep.subr.bf16.mxu0 0
    %1636 = vmatpush1.bf16.msra.mxu0 0
    %1637 = vmatprep.subr.bf16.mxu0 0
    %1638 = vmatpush1.bf16.msra.mxu0 0
    %1639 = vmatprep.subr.bf16.mxu0 0
    %1640 = vmatpush1.bf16.msra.mxu0 0
    %1641 = vmatprep.subr.bf16.mxu0 0
    %1642 = vmatpush1.bf16.msra.mxu0 0
    %1643 = vmatprep.subr.bf16.mxu0 0
    %1644 = vmatpush1.bf16.msra.mxu0 0
    %1645 = vmatprep.subr.bf16.mxu0 0
    %1646 = vmatpush1.bf16.msra.mxu0 0
    %1647 = vmatprep.subr.bf16.mxu0 0
    %1648 = vmatpush1.bf16.msra.mxu0 0
    %1649 = vmatprep.subr.bf16.mxu0 0
    %1650 = vmatpush1.bf16.msra.mxu0 0
    %1651 = vmatprep.subr.bf16.mxu0 0
    %1652 = vmatpush1.bf16.msra.mxu0 0
    %1653 = vmatprep.subr.bf16.mxu0 0
    %1654 = vmatpush1.bf16.msra.mxu0 0
    %1655 = vmatprep.mubr.bf16.mxu0 0
    %1656 = vmatmul.mubr.bf16.gmra.mrb[0].mxu0 %v1334
    %v1657 = vpop.f32.mrb[0].mxu0
    %v1658 = vadd.f32 %v1617, %v1657
    %v1659 = vpop.f32.mrb[0].mxu0
    %v1660 = vadd.f32 %v1619, %v1659
    %v1661 = vpop.f32.mrb[0].mxu0
    %v1662 = vpop.f32.mrb[0].mxu0
    %1663 = vdwg.mxu0
    %v1664 = vmax.f32 %v1494, 0.0
    %v1665 = vmax.f32 %v1496, 0.0
    %v1666 = vmax.f32 %v1658, 0.0
    %v1667 = vmax.f32 %v1660, 0.0
    %v1668 = vpack.c.bf16 %v1664, %v1664
    %v1669 = vpack.c.bf16 %v1665, %v1665
    %v1670 = vpack.c.bf16 %v1666, %v1666
    %v1671 = vpack.c.bf16 %v1667, %v1667
    %v1672 = vld [vmem:[#allocation7] sm:$0xff]
    %v1673 = vld [vmem:[#allocation7 + $0x8] sm:$0xff]
    %v1674 = vld [vmem:[#allocation7 + $0x10] sm:$0xff]
    %v1675 = vld [vmem:[#allocation7 + $0x18] sm:$0xff]
    %v1676 = vld [vmem:[#allocation7 + $0x20] sm:$0xff]
    %v1677 = vld [vmem:[#allocation7 + $0x28] sm:$0xff]
    %v1678 = vld [vmem:[#allocation7 + $0x30] sm:$0xff]
    %v1679 = vld [vmem:[#allocation7 + $0x38] sm:$0xff]
    %v1680 = vld [vmem:[#allocation7 + $0x40] sm:$0xff]
    %v1681 = vld [vmem:[#allocation7 + $0x48] sm:$0xff]
    %v1682 = vld [vmem:[#allocation7 + $0x50] sm:$0xff]
    %v1683 = vld [vmem:[#allocation7 + $0x58] sm:$0xff]
    %v1684 = vld [vmem:[#allocation7 + $0x60] sm:$0xff]
    %v1685 = vld [vmem:[#allocation7 + $0x68] sm:$0xff]
    %v1686 = vld [vmem:[#allocation7 + $0x70] sm:$0xff]
    %v1687 = vld [vmem:[#allocation7 + $0x78] sm:$0xff]
    %v1688 = vld [vmem:[#allocation7 + $0x80] sm:$0xff]
    %v1689 = vld [vmem:[#allocation7 + $0x88] sm:$0xff]
    %v1690 = vld [vmem:[#allocation7 + $0x90] sm:$0xff]
    %v1691 = vld [vmem:[#allocation7 + $0x98] sm:$0xff]
    %v1692 = vld [vmem:[#allocation7 + $0xa0] sm:$0xff]
    %v1693 = vld [vmem:[#allocation7 + $0xa8] sm:$0xff]
    %v1694 = vld [vmem:[#allocation7 + $0xb0] sm:$0xff]
    %v1695 = vld [vmem:[#allocation7 + $0xb8] sm:$0xff]
    %v1696 = vld [vmem:[#allocation7 + $0xc0] sm:$0xff]
    %v1697 = vld [vmem:[#allocation7 + $0xc8] sm:$0xff]
    %v1698 = vld [vmem:[#allocation7 + $0xd0] sm:$0xff]
    %v1699 = vld [vmem:[#allocation7 + $0xd8] sm:$0xff]
    %v1700 = vld [vmem:[#allocation7 + $0xe0] sm:$0xff]
    %v1701 = vld [vmem:[#allocation7 + $0xe8] sm:$0xff]
    %v1702 = vld [vmem:[#allocation7 + $0xf0] sm:$0xff]
    %v1703 = vld [vmem:[#allocation7 + $0xf8] sm:$0xff]
    %v1704 = vld [vmem:[#allocation7 + $0x100] sm:$0xff]
    %v1705 = vld [vmem:[#allocation7 + $0x108] sm:$0xff]
    %v1706 = vld [vmem:[#allocation7 + $0x110] sm:$0xff]
    %v1707 = vld [vmem:[#allocation7 + $0x118] sm:$0xff]
    %v1708 = vld [vmem:[#allocation7 + $0x120] sm:$0xff]
    %v1709 = vld [vmem:[#allocation7 + $0x128] sm:$0xff]
    %v1710 = vld [vmem:[#allocation7 + $0x130] sm:$0xff]
    %v1711 = vld [vmem:[#allocation7 + $0x138] sm:$0xff]
    %v1712 = vld [vmem:[#allocation7 + $0x140] sm:$0xff]
    %v1713 = vld [vmem:[#allocation7 + $0x148] sm:$0xff]
    %v1714 = vld [vmem:[#allocation7 + $0x150] sm:$0xff]
    %v1715 = vld [vmem:[#allocation7 + $0x158] sm:$0xff]
    %v1716 = vld [vmem:[#allocation7 + $0x160] sm:$0xff]
    %v1717 = vld [vmem:[#allocation7 + $0x168] sm:$0xff]
    %v1718 = vld [vmem:[#allocation7 + $0x170] sm:$0xff]
    %v1719 = vld [vmem:[#allocation7 + $0x178] sm:$0xff]
    %v1720 = vld [vmem:[#allocation7 + $0x180] sm:$0xff]
    %v1721 = vld [vmem:[#allocation7 + $0x188] sm:$0xff]
    %v1722 = vld [vmem:[#allocation7 + $0x190] sm:$0xff]
    %v1723 = vld [vmem:[#allocation7 + $0x198] sm:$0xff]
    %v1724 = vld [vmem:[#allocation7 + $0x1a0] sm:$0xff]
    %v1725 = vld [vmem:[#allocation7 + $0x1a8] sm:$0xff]
    %v1726 = vld [vmem:[#allocation7 + $0x1b0] sm:$0xff]
    %v1727 = vld [vmem:[#allocation7 + $0x1b8] sm:$0xff]
    %v1728 = vld [vmem:[#allocation7 + $0x1c0] sm:$0xff]
    %v1729 = vld [vmem:[#allocation7 + $0x1c8] sm:$0xff]
    %v1730 = vld [vmem:[#allocation7 + $0x1d0] sm:$0xff]
    %v1731 = vld [vmem:[#allocation7 + $0x1d8] sm:$0xff]
    %v1732 = vld [vmem:[#allocation7 + $0x1e0] sm:$0xff]
    %v1733 = vld [vmem:[#allocation7 + $0x1e8] sm:$0xff]
    %v1734 = vld [vmem:[#allocation7 + $0x1f0] sm:$0xff]
    %v1735 = vld [vmem:[#allocation7 + $0x1f8] sm:$0xff]
    %v1736 = vld [vmem:[#allocation7 + $0x200] sm:$0xff]
    %v1737 = vld [vmem:[#allocation7 + $0x208] sm:$0xff]
    %v1738 = vld [vmem:[#allocation7 + $0x210] sm:$0xff]
    %v1739 = vld [vmem:[#allocation7 + $0x218] sm:$0xff]
    %v1740 = vld [vmem:[#allocation7 + $0x220] sm:$0xff]
    %v1741 = vld [vmem:[#allocation7 + $0x228] sm:$0xff]
    %v1742 = vld [vmem:[#allocation7 + $0x230] sm:$0xff]
    %v1743 = vld [vmem:[#allocation7 + $0x238] sm:$0xff]
    %v1744 = vld [vmem:[#allocation7 + $0x240] sm:$0xff]
    %v1745 = vld [vmem:[#allocation7 + $0x248] sm:$0xff]
    %v1746 = vld [vmem:[#allocation7 + $0x250] sm:$0xff]
    %v1747 = vld [vmem:[#allocation7 + $0x258] sm:$0xff]
    %v1748 = vld [vmem:[#allocation7 + $0x260] sm:$0xff]
    %v1749 = vld [vmem:[#allocation7 + $0x268] sm:$0xff]
    %v1750 = vld [vmem:[#allocation7 + $0x270] sm:$0xff]
    %v1751 = vld [vmem:[#allocation7 + $0x278] sm:$0xff]
    %v1752 = vld [vmem:[#allocation7 + $0x280] sm:$0xff]
    %v1753 = vld [vmem:[#allocation7 + $0x288] sm:$0xff]
    %v1754 = vld [vmem:[#allocation7 + $0x290] sm:$0xff]
    %v1755 = vld [vmem:[#allocation7 + $0x298] sm:$0xff]
    %v1756 = vld [vmem:[#allocation7 + $0x2a0] sm:$0xff]
    %v1757 = vld [vmem:[#allocation7 + $0x2a8] sm:$0xff]
    %v1758 = vld [vmem:[#allocation7 + $0x2b0] sm:$0xff]
    %v1759 = vld [vmem:[#allocation7 + $0x2b8] sm:$0xff]
    %v1760 = vld [vmem:[#allocation7 + $0x2c0] sm:$0xff]
    %v1761 = vld [vmem:[#allocation7 + $0x2c8] sm:$0xff]
    %v1762 = vld [vmem:[#allocation7 + $0x2d0] sm:$0xff]
    %v1763 = vld [vmem:[#allocation7 + $0x2d8] sm:$0xff]
    %v1764 = vld [vmem:[#allocation7 + $0x2e0] sm:$0xff]
    %v1765 = vld [vmem:[#allocation7 + $0x2e8] sm:$0xff]
    %v1766 = vld [vmem:[#allocation7 + $0x2f0] sm:$0xff]
    %v1767 = vld [vmem:[#allocation7 + $0x2f8] sm:$0xff]
    %v1768 = vld [vmem:[#allocation7 + $0x300] sm:$0xff]
    %v1769 = vld [vmem:[#allocation7 + $0x308] sm:$0xff]
    %v1770 = vld [vmem:[#allocation7 + $0x310] sm:$0xff]
    %v1771 = vld [vmem:[#allocation7 + $0x318] sm:$0xff]
    %v1772 = vld [vmem:[#allocation7 + $0x320] sm:$0xff]
    %v1773 = vld [vmem:[#allocation7 + $0x328] sm:$0xff]
    %v1774 = vld [vmem:[#allocation7 + $0x330] sm:$0xff]
    %v1775 = vld [vmem:[#allocation7 + $0x338] sm:$0xff]
    %v1776 = vld [vmem:[#allocation7 + $0x340] sm:$0xff]
    %v1777 = vld [vmem:[#allocation7 + $0x348] sm:$0xff]
    %v1778 = vld [vmem:[#allocation7 + $0x350] sm:$0xff]
    %v1779 = vld [vmem:[#allocation7 + $0x358] sm:$0xff]
    %v1780 = vld [vmem:[#allocation7 + $0x360] sm:$0xff]
    %v1781 = vld [vmem:[#allocation7 + $0x368] sm:$0xff]
    %v1782 = vld [vmem:[#allocation7 + $0x370] sm:$0xff]
    %v1783 = vld [vmem:[#allocation7 + $0x378] sm:$0xff]
    %v1784 = vld [vmem:[#allocation7 + $0x380] sm:$0xff]
    %v1785 = vld [vmem:[#allocation7 + $0x388] sm:$0xff]
    %v1786 = vld [vmem:[#allocation7 + $0x390] sm:$0xff]
    %v1787 = vld [vmem:[#allocation7 + $0x398] sm:$0xff]
    %v1788 = vld [vmem:[#allocation7 + $0x3a0] sm:$0xff]
    %v1789 = vld [vmem:[#allocation7 + $0x3a8] sm:$0xff]
    %v1790 = vld [vmem:[#allocation7 + $0x3b0] sm:$0xff]
    %v1791 = vld [vmem:[#allocation7 + $0x3b8] sm:$0xff]
    %v1792 = vld [vmem:[#allocation7 + $0x3c0] sm:$0xff]
    %v1793 = vld [vmem:[#allocation7 + $0x3c8] sm:$0xff]
    %v1794 = vld [vmem:[#allocation7 + $0x3d0] sm:$0xff]
    %v1795 = vld [vmem:[#allocation7 + $0x3d8] sm:$0xff]
    %v1796 = vld [vmem:[#allocation7 + $0x3e0] sm:$0xff]
    %v1797 = vld [vmem:[#allocation7 + $0x3e8] sm:$0xff]
    %v1798 = vld [vmem:[#allocation7 + $0x3f0] sm:$0xff]
    %v1799 = vld [vmem:[#allocation7 + $0x3f8] sm:$0xff]
    %v1800 = vld [vmem:[#allocation7 + $0x400] sm:$0xff]
    %v1801 = vld [vmem:[#allocation7 + $0x408] sm:$0xff]
    %v1802 = vld [vmem:[#allocation7 + $0x410] sm:$0xff]
    %v1803 = vld [vmem:[#allocation7 + $0x418] sm:$0xff]
    %v1804 = vld [vmem:[#allocation7 + $0x420] sm:$0xff]
    %v1805 = vld [vmem:[#allocation7 + $0x428] sm:$0xff]
    %v1806 = vld [vmem:[#allocation7 + $0x430] sm:$0xff]
    %v1807 = vld [vmem:[#allocation7 + $0x438] sm:$0xff]
    %v1808 = vld [vmem:[#allocation7 + $0x440] sm:$0xff]
    %v1809 = vld [vmem:[#allocation7 + $0x448] sm:$0xff]
    %v1810 = vld [vmem:[#allocation7 + $0x450] sm:$0xff]
    %v1811 = vld [vmem:[#allocation7 + $0x458] sm:$0xff]
    %v1812 = vld [vmem:[#allocation7 + $0x460] sm:$0xff]
    %v1813 = vld [vmem:[#allocation7 + $0x468] sm:$0xff]
    %v1814 = vld [vmem:[#allocation7 + $0x470] sm:$0xff]
    %v1815 = vld [vmem:[#allocation7 + $0x478] sm:$0xff]
    %v1816 = vld [vmem:[#allocation7 + $0x480] sm:$0xff]
    %v1817 = vld [vmem:[#allocation7 + $0x488] sm:$0xff]
    %v1818 = vld [vmem:[#allocation7 + $0x490] sm:$0xff]
    %v1819 = vld [vmem:[#allocation7 + $0x498] sm:$0xff]
    %v1820 = vld [vmem:[#allocation7 + $0x4a0] sm:$0xff]
    %v1821 = vld [vmem:[#allocation7 + $0x4a8] sm:$0xff]
    %v1822 = vld [vmem:[#allocation7 + $0x4b0] sm:$0xff]
    %v1823 = vld [vmem:[#allocation7 + $0x4b8] sm:$0xff]
    %v1824 = vld [vmem:[#allocation7 + $0x4c0] sm:$0xff]
    %v1825 = vld [vmem:[#allocation7 + $0x4c8] sm:$0xff]
    %v1826 = vld [vmem:[#allocation7 + $0x4d0] sm:$0xff]
    %v1827 = vld [vmem:[#allocation7 + $0x4d8] sm:$0xff]
    %v1828 = vld [vmem:[#allocation7 + $0x4e0] sm:$0xff]
    %v1829 = vld [vmem:[#allocation7 + $0x4e8] sm:$0xff]
    %v1830 = vld [vmem:[#allocation7 + $0x4f0] sm:$0xff]
    %v1831 = vld [vmem:[#allocation7 + $0x4f8] sm:$0xff]
    %v1832 = vld [vmem:[#allocation7 + $0x500] sm:$0xff]
    %v1833 = vld [vmem:[#allocation7 + $0x508] sm:$0xff]
    %v1834 = vld [vmem:[#allocation7 + $0x510] sm:$0xff]
    %v1835 = vld [vmem:[#allocation7 + $0x518] sm:$0xff]
    %v1836 = vld [vmem:[#allocation7 + $0x520] sm:$0xff]
    %v1837 = vld [vmem:[#allocation7 + $0x528] sm:$0xff]
    %v1838 = vld [vmem:[#allocation7 + $0x530] sm:$0xff]
    %v1839 = vld [vmem:[#allocation7 + $0x538] sm:$0xff]
    %v1840 = vld [vmem:[#allocation7 + $0x540] sm:$0xff]
    %v1841 = vld [vmem:[#allocation7 + $0x548] sm:$0xff]
    %v1842 = vld [vmem:[#allocation7 + $0x550] sm:$0xff]
    %v1843 = vld [vmem:[#allocation7 + $0x558] sm:$0xff]
    %v1844 = vld [vmem:[#allocation7 + $0x560] sm:$0xff]
    %v1845 = vld [vmem:[#allocation7 + $0x568] sm:$0xff]
    %v1846 = vld [vmem:[#allocation7 + $0x570] sm:$0xff]
    %v1847 = vld [vmem:[#allocation7 + $0x578] sm:$0xff]
    %v1848 = vld [vmem:[#allocation7 + $0x580] sm:$0xff]
    %v1849 = vld [vmem:[#allocation7 + $0x588] sm:$0xff]
    %v1850 = vld [vmem:[#allocation7 + $0x590] sm:$0xff]
    %v1851 = vld [vmem:[#allocation7 + $0x598] sm:$0xff]
    %v1852 = vld [vmem:[#allocation7 + $0x5a0] sm:$0xff]
    %v1853 = vld [vmem:[#allocation7 + $0x5a8] sm:$0xff]
    %v1854 = vld [vmem:[#allocation7 + $0x5b0] sm:$0xff]
    %v1855 = vld [vmem:[#allocation7 + $0x5b8] sm:$0xff]
    %v1856 = vld [vmem:[#allocation7 + $0x5c0] sm:$0xff]
    %v1857 = vld [vmem:[#allocation7 + $0x5c8] sm:$0xff]
    %v1858 = vld [vmem:[#allocation7 + $0x5d0] sm:$0xff]
    %v1859 = vld [vmem:[#allocation7 + $0x5d8] sm:$0xff]
    %v1860 = vld [vmem:[#allocation7 + $0x5e0] sm:$0xff]
    %v1861 = vld [vmem:[#allocation7 + $0x5e8] sm:$0xff]
    %v1862 = vld [vmem:[#allocation7 + $0x5f0] sm:$0xff]
    %v1863 = vld [vmem:[#allocation7 + $0x5f8] sm:$0xff]
    %v1864 = vld [vmem:[%s4] sm:$0x3f]
    %v1866 = vlaneseq
    %v1867 = vshrl.u32 %v1866, 7
    %v1868 = vsub.s32 0, %v1867
    %v1869 = vrot.slane %v1864, %v1868
    %v1870 = vlaneseq
    %v1871 = vshrl.u32 %v1870, 7
    %v1872 = vsub.s32 1, %v1871
    %v1873 = vrot.slane %v1864, %v1872
    %v1874 = vlaneseq
    %v1875 = vshrl.u32 %v1874, 7
    %v1876 = vsub.s32 2, %v1875
    %v1877 = vrot.slane %v1864, %v1876
    %v1878 = vlaneseq
    %v1879 = vshrl.u32 %v1878, 7
    %v1880 = vsub.s32 3, %v1879
    %v1881 = vrot.slane %v1864, %v1880
    %v1882 = vlaneseq
    %v1883 = vshrl.u32 %v1882, 7
    %v1884 = vsub.s32 4, %v1883
    %v1885 = vrot.slane %v1864, %v1884
    %v1886 = vlaneseq
    %v1887 = vshrl.u32 %v1886, 7
    %v1888 = vsub.s32 5, %v1887
    %v1889 = vrot.slane %v1864, %v1888
    %v2088 = vunpack.c.l.b16 %v1672
    %v2089 = vunpack.c.h.b16 %v1672
    %v2090 = vunpack.c.l.b16 %v1673
    %v2091 = vunpack.c.h.b16 %v1673
    %v2092 = vunpack.c.l.b16 %v1674
    %v2093 = vunpack.c.h.b16 %v1674
    %v2094 = vunpack.c.l.b16 %v1675
    %v2095 = vunpack.c.h.b16 %v1675
    %v2096 = vunpack.c.l.b16 %v1676
    %v2097 = vunpack.c.h.b16 %v1676
    %v2098 = vunpack.c.l.b16 %v1677
    %v2099 = vunpack.c.h.b16 %v1677
    %v2100 = vunpack.c.l.b16 %v1678
    %v2101 = vunpack.c.h.b16 %v1678
    %v2102 = vunpack.c.l.b16 %v1679
    %v2103 = vunpack.c.h.b16 %v1679
    %v2104 = vunpack.c.l.b16 %v1680
    %v2105 = vunpack.c.h.b16 %v1680
    %v2106 = vunpack.c.l.b16 %v1681
    %v2107 = vunpack.c.h.b16 %v1681
    %v2108 = vunpack.c.l.b16 %v1682
    %v2109 = vunpack.c.h.b16 %v1682
    %v2110 = vunpack.c.l.b16 %v1683
    %v2111 = vunpack.c.h.b16 %v1683
    %v2112 = vunpack.c.l.b16 %v1684
    %v2113 = vunpack.c.h.b16 %v1684
    %v2114 = vunpack.c.l.b16 %v1685
    %v2115 = vunpack.c.h.b16 %v1685
    %v2116 = vunpack.c.l.b16 %v1686
    %v2117 = vunpack.c.h.b16 %v1686
    %v2118 = vunpack.c.l.b16 %v1687
    %v2119 = vunpack.c.h.b16 %v1687
    %v2120 = vunpack.c.l.b16 %v1688
    %v2121 = vunpack.c.h.b16 %v1688
    %v2122 = vunpack.c.l.b16 %v1689
    %v2123 = vunpack.c.h.b16 %v1689
    %v2124 = vunpack.c.l.b16 %v1690
    %v2125 = vunpack.c.h.b16 %v1690
    %v2126 = vunpack.c.l.b16 %v1691
    %v2127 = vunpack.c.h.b16 %v1691
    %v2128 = vunpack.c.l.b16 %v1692
    %v2129 = vunpack.c.h.b16 %v1692
    %v2130 = vunpack.c.l.b16 %v1693
    %v2131 = vunpack.c.h.b16 %v1693
    %v2132 = vunpack.c.l.b16 %v1694
    %v2133 = vunpack.c.h.b16 %v1694
    %v2134 = vunpack.c.l.b16 %v1695
    %v2135 = vunpack.c.h.b16 %v1695
    %v2136 = vunpack.c.l.b16 %v1696
    %v2137 = vunpack.c.h.b16 %v1696
    %v2138 = vunpack.c.l.b16 %v1697
    %v2139 = vunpack.c.h.b16 %v1697
    %v2140 = vunpack.c.l.b16 %v1698
    %v2141 = vunpack.c.h.b16 %v1698
    %v2142 = vunpack.c.l.b16 %v1699
    %v2143 = vunpack.c.h.b16 %v1699
    %v2144 = vunpack.c.l.b16 %v1700
    %v2145 = vunpack.c.h.b16 %v1700
    %v2146 = vunpack.c.l.b16 %v1701
    %v2147 = vunpack.c.h.b16 %v1701
    %v2148 = vunpack.c.l.b16 %v1702
    %v2149 = vunpack.c.h.b16 %v1702
    %v2150 = vunpack.c.l.b16 %v1703
    %v2151 = vunpack.c.h.b16 %v1703
    %v2152 = vunpack.c.l.b16 %v1704
    %v2153 = vunpack.c.h.b16 %v1704
    %v2154 = vunpack.c.l.b16 %v1705
    %v2155 = vunpack.c.h.b16 %v1705
    %v2156 = vunpack.c.l.b16 %v1706
    %v2157 = vunpack.c.h.b16 %v1706
    %v2158 = vunpack.c.l.b16 %v1707
    %v2159 = vunpack.c.h.b16 %v1707
    %v2160 = vunpack.c.l.b16 %v1708
    %v2161 = vunpack.c.h.b16 %v1708
    %v2162 = vunpack.c.l.b16 %v1709
    %v2163 = vunpack.c.h.b16 %v1709
    %v2164 = vunpack.c.l.b16 %v1710
    %v2165 = vunpack.c.h.b16 %v1710
    %v2166 = vunpack.c.l.b16 %v1711
    %v2167 = vunpack.c.h.b16 %v1711
    %v2168 = vunpack.c.l.b16 %v1712
    %v2169 = vunpack.c.h.b16 %v1712
    %v2170 = vunpack.c.l.b16 %v1713
    %v2171 = vunpack.c.h.b16 %v1713
    %v2172 = vunpack.c.l.b16 %v1714
    %v2173 = vunpack.c.h.b16 %v1714
    %v2174 = vunpack.c.l.b16 %v1715
    %v2175 = vunpack.c.h.b16 %v1715
    %v2176 = vunpack.c.l.b16 %v1716
    %v2177 = vunpack.c.h.b16 %v1716
    %v2178 = vunpack.c.l.b16 %v1717
    %v2179 = vunpack.c.h.b16 %v1717
    %v2180 = vunpack.c.l.b16 %v1718
    %v2181 = vunpack.c.h.b16 %v1718
    %v2182 = vunpack.c.l.b16 %v1719
    %v2183 = vunpack.c.h.b16 %v1719
    %v2184 = vunpack.c.l.b16 %v1720
    %v2185 = vunpack.c.h.b16 %v1720
    %v2186 = vunpack.c.l.b16 %v1721
    %v2187 = vunpack.c.h.b16 %v1721
    %v2188 = vunpack.c.l.b16 %v1722
    %v2189 = vunpack.c.h.b16 %v1722
    %v2190 = vunpack.c.l.b16 %v1723
    %v2191 = vunpack.c.h.b16 %v1723
    %v2192 = vunpack.c.l.b16 %v1724
    %v2193 = vunpack.c.h.b16 %v1724
    %v2194 = vunpack.c.l.b16 %v1725
    %v2195 = vunpack.c.h.b16 %v1725
    %v2196 = vunpack.c.l.b16 %v1726
    %v2197 = vunpack.c.h.b16 %v1726
    %v2198 = vunpack.c.l.b16 %v1727
    %v2199 = vunpack.c.h.b16 %v1727
    %v2200 = vunpack.c.l.b16 %v1728
    %v2201 = vunpack.c.h.b16 %v1728
    %v2202 = vunpack.c.l.b16 %v1729
    %v2203 = vunpack.c.h.b16 %v1729
    %v2204 = vunpack.c.l.b16 %v1730
    %v2205 = vunpack.c.h.b16 %v1730
    %v2206 = vunpack.c.l.b16 %v1731
    %v2207 = vunpack.c.h.b16 %v1731
    %v2208 = vunpack.c.l.b16 %v1732
    %v2209 = vunpack.c.h.b16 %v1732
    %v2210 = vunpack.c.l.b16 %v1733
    %v2211 = vunpack.c.h.b16 %v1733
    %v2212 = vunpack.c.l.b16 %v1734
    %v2213 = vunpack.c.h.b16 %v1734
    %v2214 = vunpack.c.l.b16 %v1735
    %v2215 = vunpack.c.h.b16 %v1735
    %v2216 = vunpack.c.l.b16 %v1736
    %v2217 = vunpack.c.h.b16 %v1736
    %v2218 = vunpack.c.l.b16 %v1737
    %v2219 = vunpack.c.h.b16 %v1737
    %v2220 = vunpack.c.l.b16 %v1738
    %v2221 = vunpack.c.h.b16 %v1738
    %v2222 = vunpack.c.l.b16 %v1739
    %v2223 = vunpack.c.h.b16 %v1739
    %v2224 = vunpack.c.l.b16 %v1740
    %v2225 = vunpack.c.h.b16 %v1740
    %v2226 = vunpack.c.l.b16 %v1741
    %v2227 = vunpack.c.h.b16 %v1741
    %v2228 = vunpack.c.l.b16 %v1742
    %v2229 = vunpack.c.h.b16 %v1742
    %v2230 = vunpack.c.l.b16 %v1743
    %v2231 = vunpack.c.h.b16 %v1743
    %v2232 = vunpack.c.l.b16 %v1744
    %v2233 = vunpack.c.h.b16 %v1744
    %v2234 = vunpack.c.l.b16 %v1745
    %v2235 = vunpack.c.h.b16 %v1745
    %v2236 = vunpack.c.l.b16 %v1746
    %v2237 = vunpack.c.h.b16 %v1746
    %v2238 = vunpack.c.l.b16 %v1747
    %v2239 = vunpack.c.h.b16 %v1747
    %v2240 = vunpack.c.l.b16 %v1748
    %v2241 = vunpack.c.h.b16 %v1748
    %v2242 = vunpack.c.l.b16 %v1749
    %v2243 = vunpack.c.h.b16 %v1749
    %v2244 = vunpack.c.l.b16 %v1750
    %v2245 = vunpack.c.h.b16 %v1750
    %v2246 = vunpack.c.l.b16 %v1751
    %v2247 = vunpack.c.h.b16 %v1751
    %v2248 = vunpack.c.l.b16 %v1752
    %v2249 = vunpack.c.h.b16 %v1752
    %v2250 = vunpack.c.l.b16 %v1753
    %v2251 = vunpack.c.h.b16 %v1753
    %v2252 = vunpack.c.l.b16 %v1754
    %v2253 = vunpack.c.h.b16 %v1754
    %v2254 = vunpack.c.l.b16 %v1755
    %v2255 = vunpack.c.h.b16 %v1755
    %v2256 = vunpack.c.l.b16 %v1756
    %v2257 = vunpack.c.h.b16 %v1756
    %v2258 = vunpack.c.l.b16 %v1757
    %v2259 = vunpack.c.h.b16 %v1757
    %v2260 = vunpack.c.l.b16 %v1758
    %v2261 = vunpack.c.h.b16 %v1758
    %v2262 = vunpack.c.l.b16 %v1759
    %v2263 = vunpack.c.h.b16 %v1759
    %v2264 = vunpack.c.l.b16 %v1760
    %v2265 = vunpack.c.h.b16 %v1760
    %v2266 = vunpack.c.l.b16 %v1761
    %v2267 = vunpack.c.h.b16 %v1761
    %v2268 = vunpack.c.l.b16 %v1762
    %v2269 = vunpack.c.h.b16 %v1762
    %v2270 = vunpack.c.l.b16 %v1763
    %v2271 = vunpack.c.h.b16 %v1763
    %v2272 = vunpack.c.l.b16 %v1764
    %v2273 = vunpack.c.h.b16 %v1764
    %v2274 = vunpack.c.l.b16 %v1765
    %v2275 = vunpack.c.h.b16 %v1765
    %v2276 = vunpack.c.l.b16 %v1766
    %v2277 = vunpack.c.h.b16 %v1766
    %v2278 = vunpack.c.l.b16 %v1767
    %v2279 = vunpack.c.h.b16 %v1767
    %v2280 = vunpack.c.l.b16 %v1768
    %v2281 = vunpack.c.h.b16 %v1768
    %v2282 = vunpack.c.l.b16 %v1769
    %v2283 = vunpack.c.h.b16 %v1769
    %v2284 = vunpack.c.l.b16 %v1770
    %v2285 = vunpack.c.h.b16 %v1770
    %v2286 = vunpack.c.l.b16 %v1771
    %v2287 = vunpack.c.h.b16 %v1771
    %v2288 = vunpack.c.l.b16 %v1772
    %v2289 = vunpack.c.h.b16 %v1772
    %v2290 = vunpack.c.l.b16 %v1773
    %v2291 = vunpack.c.h.b16 %v1773
    %v2292 = vunpack.c.l.b16 %v1774
    %v2293 = vunpack.c.h.b16 %v1774
    %v2294 = vunpack.c.l.b16 %v1775
    %v2295 = vunpack.c.h.b16 %v1775
    %v2296 = vunpack.c.l.b16 %v1776
    %v2297 = vunpack.c.h.b16 %v1776
    %v2298 = vunpack.c.l.b16 %v1777
    %v2299 = vunpack.c.h.b16 %v1777
    %v2300 = vunpack.c.l.b16 %v1778
    %v2301 = vunpack.c.h.b16 %v1778
    %v2302 = vunpack.c.l.b16 %v1779
    %v2303 = vunpack.c.h.b16 %v1779
    %v2304 = vunpack.c.l.b16 %v1780
    %v2305 = vunpack.c.h.b16 %v1780
    %v2306 = vunpack.c.l.b16 %v1781
    %v2307 = vunpack.c.h.b16 %v1781
    %v2308 = vunpack.c.l.b16 %v1782
    %v2309 = vunpack.c.h.b16 %v1782
    %v2310 = vunpack.c.l.b16 %v1783
    %v2311 = vunpack.c.h.b16 %v1783
    %v2312 = vunpack.c.l.b16 %v1784
    %v2313 = vunpack.c.h.b16 %v1784
    %v2314 = vunpack.c.l.b16 %v1785
    %v2315 = vunpack.c.h.b16 %v1785
    %v2316 = vunpack.c.l.b16 %v1786
    %v2317 = vunpack.c.h.b16 %v1786
    %v2318 = vunpack.c.l.b16 %v1787
    %v2319 = vunpack.c.h.b16 %v1787
    %v2320 = vunpack.c.l.b16 %v1788
    %v2321 = vunpack.c.h.b16 %v1788
    %v2322 = vunpack.c.l.b16 %v1789
    %v2323 = vunpack.c.h.b16 %v1789
    %v2324 = vunpack.c.l.b16 %v1790
    %v2325 = vunpack.c.h.b16 %v1790
    %v2326 = vunpack.c.l.b16 %v1791
    %v2327 = vunpack.c.h.b16 %v1791
    %v2328 = vunpack.c.l.b16 %v1792
    %v2329 = vunpack.c.h.b16 %v1792
    %v2330 = vunpack.c.l.b16 %v1793
    %v2331 = vunpack.c.h.b16 %v1793
    %v2332 = vunpack.c.l.b16 %v1794
    %v2333 = vunpack.c.h.b16 %v1794
    %v2334 = vunpack.c.l.b16 %v1795
    %v2335 = vunpack.c.h.b16 %v1795
    %v2336 = vunpack.c.l.b16 %v1796
    %v2337 = vunpack.c.h.b16 %v1796
    %v2338 = vunpack.c.l.b16 %v1797
    %v2339 = vunpack.c.h.b16 %v1797
    %v2340 = vunpack.c.l.b16 %v1798
    %v2341 = vunpack.c.h.b16 %v1798
    %v2342 = vunpack.c.l.b16 %v1799
    %v2343 = vunpack.c.h.b16 %v1799
    %v2344 = vunpack.c.l.b16 %v1800
    %v2345 = vunpack.c.h.b16 %v1800
    %v2346 = vunpack.c.l.b16 %v1801
    %v2347 = vunpack.c.h.b16 %v1801
    %v2348 = vunpack.c.l.b16 %v1802
    %v2349 = vunpack.c.h.b16 %v1802
    %v2350 = vunpack.c.l.b16 %v1803
    %v2351 = vunpack.c.h.b16 %v1803
    %v2352 = vunpack.c.l.b16 %v1804
    %v2353 = vunpack.c.h.b16 %v1804
    %v2354 = vunpack.c.l.b16 %v1805
    %v2355 = vunpack.c.h.b16 %v1805
    %v2356 = vunpack.c.l.b16 %v1806
    %v2357 = vunpack.c.h.b16 %v1806
    %v2358 = vunpack.c.l.b16 %v1807
    %v2359 = vunpack.c.h.b16 %v1807
    %v2360 = vunpack.c.l.b16 %v1808
    %v2361 = vunpack.c.h.b16 %v1808
    %v2362 = vunpack.c.l.b16 %v1809
    %v2363 = vunpack.c.h.b16 %v1809
    %v2364 = vunpack.c.l.b16 %v1810
    %v2365 = vunpack.c.h.b16 %v1810
    %v2366 = vunpack.c.l.b16 %v1811
    %v2367 = vunpack.c.h.b16 %v1811
    %v2368 = vunpack.c.l.b16 %v1812
    %v2369 = vunpack.c.h.b16 %v1812
    %v2370 = vunpack.c.l.b16 %v1813
    %v2371 = vunpack.c.h.b16 %v1813
    %v2372 = vunpack.c.l.b16 %v1814
    %v2373 = vunpack.c.h.b16 %v1814
    %v2374 = vunpack.c.l.b16 %v1815
    %v2375 = vunpack.c.h.b16 %v1815
    %v2376 = vunpack.c.l.b16 %v1816
    %v2377 = vunpack.c.h.b16 %v1816
    %v2378 = vunpack.c.l.b16 %v1817
    %v2379 = vunpack.c.h.b16 %v1817
    %v2380 = vunpack.c.l.b16 %v1818
    %v2381 = vunpack.c.h.b16 %v1818
    %v2382 = vunpack.c.l.b16 %v1819
    %v2383 = vunpack.c.h.b16 %v1819
    %v2384 = vunpack.c.l.b16 %v1820
    %v2385 = vunpack.c.h.b16 %v1820
    %v2386 = vunpack.c.l.b16 %v1821
    %v2387 = vunpack.c.h.b16 %v1821
    %v2388 = vunpack.c.l.b16 %v1822
    %v2389 = vunpack.c.h.b16 %v1822
    %v2390 = vunpack.c.l.b16 %v1823
    %v2391 = vunpack.c.h.b16 %v1823
    %v2392 = vunpack.c.l.b16 %v1824
    %v2393 = vunpack.c.h.b16 %v1824
    %v2394 = vunpack.c.l.b16 %v1825
    %v2395 = vunpack.c.h.b16 %v1825
    %v2396 = vunpack.c.l.b16 %v1826
    %v2397 = vunpack.c.h.b16 %v1826
    %v2398 = vunpack.c.l.b16 %v1827
    %v2399 = vunpack.c.h.b16 %v1827
    %v2400 = vunpack.c.l.b16 %v1828
    %v2401 = vunpack.c.h.b16 %v1828
    %v2402 = vunpack.c.l.b16 %v1829
    %v2403 = vunpack.c.h.b16 %v1829
    %v2404 = vunpack.c.l.b16 %v1830
    %v2405 = vunpack.c.h.b16 %v1830
    %v2406 = vunpack.c.l.b16 %v1831
    %v2407 = vunpack.c.h.b16 %v1831
    %v2408 = vunpack.c.l.b16 %v1832
    %v2409 = vunpack.c.h.b16 %v1832
    %v2410 = vunpack.c.l.b16 %v1833
    %v2411 = vunpack.c.h.b16 %v1833
    %v2412 = vunpack.c.l.b16 %v1834
    %v2413 = vunpack.c.h.b16 %v1834
    %v2414 = vunpack.c.l.b16 %v1835
    %v2415 = vunpack.c.h.b16 %v1835
    %v2416 = vunpack.c.l.b16 %v1836
    %v2417 = vunpack.c.h.b16 %v1836
    %v2418 = vunpack.c.l.b16 %v1837
    %v2419 = vunpack.c.h.b16 %v1837
    %v2420 = vunpack.c.l.b16 %v1838
    %v2421 = vunpack.c.h.b16 %v1838
    %v2422 = vunpack.c.l.b16 %v1839
    %v2423 = vunpack.c.h.b16 %v1839
    %v2424 = vunpack.c.l.b16 %v1840
    %v2425 = vunpack.c.h.b16 %v1840
    %v2426 = vunpack.c.l.b16 %v1841
    %v2427 = vunpack.c.h.b16 %v1841
    %v2428 = vunpack.c.l.b16 %v1842
    %v2429 = vunpack.c.h.b16 %v1842
    %v2430 = vunpack.c.l.b16 %v1843
    %v2431 = vunpack.c.h.b16 %v1843
    %v2432 = vunpack.c.l.b16 %v1844
    %v2433 = vunpack.c.h.b16 %v1844
    %v2434 = vunpack.c.l.b16 %v1845
    %v2435 = vunpack.c.h.b16 %v1845
    %v2436 = vunpack.c.l.b16 %v1846
    %v2437 = vunpack.c.h.b16 %v1846
    %v2438 = vunpack.c.l.b16 %v1847
    %v2439 = vunpack.c.h.b16 %v1847
    %v2440 = vunpack.c.l.b16 %v1848
    %v2441 = vunpack.c.h.b16 %v1848
    %v2442 = vunpack.c.l.b16 %v1849
    %v2443 = vunpack.c.h.b16 %v1849
    %v2444 = vunpack.c.l.b16 %v1850
    %v2445 = vunpack.c.h.b16 %v1850
    %v2446 = vunpack.c.l.b16 %v1851
    %v2447 = vunpack.c.h.b16 %v1851
    %v2448 = vunpack.c.l.b16 %v1852
    %v2449 = vunpack.c.h.b16 %v1852
    %v2450 = vunpack.c.l.b16 %v1853
    %v2451 = vunpack.c.h.b16 %v1853
    %v2452 = vunpack.c.l.b16 %v1854
    %v2453 = vunpack.c.h.b16 %v1854
    %v2454 = vunpack.c.l.b16 %v1855
    %v2455 = vunpack.c.h.b16 %v1855
    %v2456 = vunpack.c.l.b16 %v1856
    %v2457 = vunpack.c.h.b16 %v1856
    %v2458 = vunpack.c.l.b16 %v1857
    %v2459 = vunpack.c.h.b16 %v1857
    %v2460 = vunpack.c.l.b16 %v1858
    %v2461 = vunpack.c.h.b16 %v1858
    %v2462 = vunpack.c.l.b16 %v1859
    %v2463 = vunpack.c.h.b16 %v1859
    %v2464 = vunpack.c.l.b16 %v1860
    %v2465 = vunpack.c.h.b16 %v1860
    %v2466 = vunpack.c.l.b16 %v1861
    %v2467 = vunpack.c.h.b16 %v1861
    %v2468 = vunpack.c.l.b16 %v1862
    %v2469 = vunpack.c.h.b16 %v1862
    %v2470 = vunpack.c.l.b16 %v1863
    %v2471 = vunpack.c.h.b16 %v1863
    %v2472 = vpack.c.b16 %v2094, %v2088
    %v2473 = vpack.c.b16 %v2095, %v2089
    %v2474 = vpack.c.b16 %v2096, %v2090
    %v2475 = vpack.c.b16 %v2097, %v2091
    %v2476 = vpack.c.b16 %v2098, %v2092
    %v2477 = vpack.c.b16 %v2099, %v2093
    %v2478 = vpack.c.b16 %v2106, %v2100
    %v2479 = vpack.c.b16 %v2107, %v2101
    %v2480 = vpack.c.b16 %v2108, %v2102
    %v2481 = vpack.c.b16 %v2109, %v2103
    %v2482 = vpack.c.b16 %v2110, %v2104
    %v2483 = vpack.c.b16 %v2111, %v2105
    %v2484 = vpack.c.b16 %v2118, %v2112
    %v2485 = vpack.c.b16 %v2119, %v2113
    %v2486 = vpack.c.b16 %v2120, %v2114
    %v2487 = vpack.c.b16 %v2121, %v2115
    %v2488 = vpack.c.b16 %v2122, %v2116
    %v2489 = vpack.c.b16 %v2123, %v2117
    %v2490 = vpack.c.b16 %v2130, %v2124
    %v2491 = vpack.c.b16 %v2131, %v2125
    %v2492 = vpack.c.b16 %v2132, %v2126
    %v2493 = vpack.c.b16 %v2133, %v2127
    %v2494 = vpack.c.b16 %v2134, %v2128
    %v2495 = vpack.c.b16 %v2135, %v2129
    %v2496 = vpack.c.b16 %v2142, %v2136
    %v2497 = vpack.c.b16 %v2143, %v2137
    %v2498 = vpack.c.b16 %v2144, %v2138
    %v2499 = vpack.c.b16 %v2145, %v2139
    %v2500 = vpack.c.b16 %v2146, %v2140
    %v2501 = vpack.c.b16 %v2147, %v2141
    %v2502 = vpack.c.b16 %v2154, %v2148
    %v2503 = vpack.c.b16 %v2155, %v2149
    %v2504 = vpack.c.b16 %v2156, %v2150
    %v2505 = vpack.c.b16 %v2157, %v2151
    %v2506 = vpack.c.b16 %v2158, %v2152
    %v2507 = vpack.c.b16 %v2159, %v2153
    %v2508 = vpack.c.b16 %v2166, %v2160
    %v2509 = vpack.c.b16 %v2167, %v2161
    %v2510 = vpack.c.b16 %v2168, %v2162
    %v2511 = vpack.c.b16 %v2169, %v2163
    %v2512 = vpack.c.b16 %v2170, %v2164
    %v2513 = vpack.c.b16 %v2171, %v2165
    %v2514 = vpack.c.b16 %v2178, %v2172
    %v2515 = vpack.c.b16 %v2179, %v2173
    %v2516 = vpack.c.b16 %v2180, %v2174
    %v2517 = vpack.c.b16 %v2181, %v2175
    %v2518 = vpack.c.b16 %v2182, %v2176
    %v2519 = vpack.c.b16 %v2183, %v2177
    %v2520 = vpack.c.b16 %v2190, %v2184
    %v2521 = vpack.c.b16 %v2191, %v2185
    %v2522 = vpack.c.b16 %v2192, %v2186
    %v2523 = vpack.c.b16 %v2193, %v2187
    %v2524 = vpack.c.b16 %v2194, %v2188
    %v2525 = vpack.c.b16 %v2195, %v2189
    %v2526 = vpack.c.b16 %v2202, %v2196
    %v2527 = vpack.c.b16 %v2203, %v2197
    %v2528 = vpack.c.b16 %v2204, %v2198
    %v2529 = vpack.c.b16 %v2205, %v2199
    %v2530 = vpack.c.b16 %v2206, %v2200
    %v2531 = vpack.c.b16 %v2207, %v2201
    %v2532 = vpack.c.b16 %v2214, %v2208
    %v2533 = vpack.c.b16 %v2215, %v2209
    %v2534 = vpack.c.b16 %v2216, %v2210
    %v2535 = vpack.c.b16 %v2217, %v2211
    %v2536 = vpack.c.b16 %v2218, %v2212
    %v2537 = vpack.c.b16 %v2219, %v2213
    %v2538 = vpack.c.b16 %v2226, %v2220
    %v2539 = vpack.c.b16 %v2227, %v2221
    %v2540 = vpack.c.b16 %v2228, %v2222
    %v2541 = vpack.c.b16 %v2229, %v2223
    %v2542 = vpack.c.b16 %v2230, %v2224
    %v2543 = vpack.c.b16 %v2231, %v2225
    %v2544 = vpack.c.b16 %v2238, %v2232
    %v2545 = vpack.c.b16 %v2239, %v2233
    %v2546 = vpack.c.b16 %v2240, %v2234
    %v2547 = vpack.c.b16 %v2241, %v2235
    %v2548 = vpack.c.b16 %v2242, %v2236
    %v2549 = vpack.c.b16 %v2243, %v2237
    %v2550 = vpack.c.b16 %v2250, %v2244
    %v2551 = vpack.c.b16 %v2251, %v2245
    %v2552 = vpack.c.b16 %v2252, %v2246
    %v2553 = vpack.c.b16 %v2253, %v2247
    %v2554 = vpack.c.b16 %v2254, %v2248
    %v2555 = vpack.c.b16 %v2255, %v2249
    %v2556 = vpack.c.b16 %v2262, %v2256
    %v2557 = vpack.c.b16 %v2263, %v2257
    %v2558 = vpack.c.b16 %v2264, %v2258
    %v2559 = vpack.c.b16 %v2265, %v2259
    %v2560 = vpack.c.b16 %v2266, %v2260
    %v2561 = vpack.c.b16 %v2267, %v2261
    %v2562 = vpack.c.b16 %v2274, %v2268
    %v2563 = vpack.c.b16 %v2275, %v2269
    %v2564 = vpack.c.b16 %v2276, %v2270
    %v2565 = vpack.c.b16 %v2277, %v2271
    %v2566 = vpack.c.b16 %v2278, %v2272
    %v2567 = vpack.c.b16 %v2279, %v2273
    %v2568 = vpack.c.b16 %v2286, %v2280
    %v2569 = vpack.c.b16 %v2287, %v2281
    %v2570 = vpack.c.b16 %v2288, %v2282
    %v2571 = vpack.c.b16 %v2289, %v2283
    %v2572 = vpack.c.b16 %v2290, %v2284
    %v2573 = vpack.c.b16 %v2291, %v2285
    %v2574 = vpack.c.b16 %v2298, %v2292
    %v2575 = vpack.c.b16 %v2299, %v2293
    %v2576 = vpack.c.b16 %v2300, %v2294
    %v2577 = vpack.c.b16 %v2301, %v2295
    %v2578 = vpack.c.b16 %v2302, %v2296
    %v2579 = vpack.c.b16 %v2303, %v2297
    %v2580 = vpack.c.b16 %v2310, %v2304
    %v2581 = vpack.c.b16 %v2311, %v2305
    %v2582 = vpack.c.b16 %v2312, %v2306
    %v2583 = vpack.c.b16 %v2313, %v2307
    %v2584 = vpack.c.b16 %v2314, %v2308
    %v2585 = vpack.c.b16 %v2315, %v2309
    %v2586 = vpack.c.b16 %v2322, %v2316
    %v2587 = vpack.c.b16 %v2323, %v2317
    %v2588 = vpack.c.b16 %v2324, %v2318
    %v2589 = vpack.c.b16 %v2325, %v2319
    %v2590 = vpack.c.b16 %v2326, %v2320
    %v2591 = vpack.c.b16 %v2327, %v2321
    %v2592 = vpack.c.b16 %v2334, %v2328
    %v2593 = vpack.c.b16 %v2335, %v2329
    %v2594 = vpack.c.b16 %v2336, %v2330
    %v2595 = vpack.c.b16 %v2337, %v2331
    %v2596 = vpack.c.b16 %v2338, %v2332
    %v2597 = vpack.c.b16 %v2339, %v2333
    %v2598 = vpack.c.b16 %v2346, %v2340
    %v2599 = vpack.c.b16 %v2347, %v2341
    %v2600 = vpack.c.b16 %v2348, %v2342
    %v2601 = vpack.c.b16 %v2349, %v2343
    %v2602 = vpack.c.b16 %v2350, %v2344
    %v2603 = vpack.c.b16 %v2351, %v2345
    %v2604 = vpack.c.b16 %v2358, %v2352
    %v2605 = vpack.c.b16 %v2359, %v2353
    %v2606 = vpack.c.b16 %v2360, %v2354
    %v2607 = vpack.c.b16 %v2361, %v2355
    %v2608 = vpack.c.b16 %v2362, %v2356
    %v2609 = vpack.c.b16 %v2363, %v2357
    %v2610 = vpack.c.b16 %v2370, %v2364
    %v2611 = vpack.c.b16 %v2371, %v2365
    %v2612 = vpack.c.b16 %v2372, %v2366
    %v2613 = vpack.c.b16 %v2373, %v2367
    %v2614 = vpack.c.b16 %v2374, %v2368
    %v2615 = vpack.c.b16 %v2375, %v2369
    %v2616 = vpack.c.b16 %v2382, %v2376
    %v2617 = vpack.c.b16 %v2383, %v2377
    %v2618 = vpack.c.b16 %v2384, %v2378
    %v2619 = vpack.c.b16 %v2385, %v2379
    %v2620 = vpack.c.b16 %v2386, %v2380
    %v2621 = vpack.c.b16 %v2387, %v2381
    %v2622 = vpack.c.b16 %v2394, %v2388
    %v2623 = vpack.c.b16 %v2395, %v2389
    %v2624 = vpack.c.b16 %v2396, %v2390
    %v2625 = vpack.c.b16 %v2397, %v2391
    %v2626 = vpack.c.b16 %v2398, %v2392
    %v2627 = vpack.c.b16 %v2399, %v2393
    %v2628 = vpack.c.b16 %v2406, %v2400
    %v2629 = vpack.c.b16 %v2407, %v2401
    %v2630 = vpack.c.b16 %v2408, %v2402
    %v2631 = vpack.c.b16 %v2409, %v2403
    %v2632 = vpack.c.b16 %v2410, %v2404
    %v2633 = vpack.c.b16 %v2411, %v2405
    %v2634 = vpack.c.b16 %v2418, %v2412
    %v2635 = vpack.c.b16 %v2419, %v2413
    %v2636 = vpack.c.b16 %v2420, %v2414
    %v2637 = vpack.c.b16 %v2421, %v2415
    %v2638 = vpack.c.b16 %v2422, %v2416
    %v2639 = vpack.c.b16 %v2423, %v2417
    %v2640 = vpack.c.b16 %v2430, %v2424
    %v2641 = vpack.c.b16 %v2431, %v2425
    %v2642 = vpack.c.b16 %v2432, %v2426
    %v2643 = vpack.c.b16 %v2433, %v2427
    %v2644 = vpack.c.b16 %v2434, %v2428
    %v2645 = vpack.c.b16 %v2435, %v2429
    %v2646 = vpack.c.b16 %v2442, %v2436
    %v2647 = vpack.c.b16 %v2443, %v2437
    %v2648 = vpack.c.b16 %v2444, %v2438
    %v2649 = vpack.c.b16 %v2445, %v2439
    %v2650 = vpack.c.b16 %v2446, %v2440
    %v2651 = vpack.c.b16 %v2447, %v2441
    %v2652 = vpack.c.b16 %v2454, %v2448
    %v2653 = vpack.c.b16 %v2455, %v2449
    %v2654 = vpack.c.b16 %v2456, %v2450
    %v2655 = vpack.c.b16 %v2457, %v2451
    %v2656 = vpack.c.b16 %v2458, %v2452
    %v2657 = vpack.c.b16 %v2459, %v2453
    %v2658 = vpack.c.b16 %v2466, %v2460
    %v2659 = vpack.c.b16 %v2467, %v2461
    %v2660 = vpack.c.b16 %v2468, %v2462
    %v2661 = vpack.c.b16 %v2469, %v2463
    %v2662 = vpack.c.b16 %v2470, %v2464
    %v2663 = vpack.c.b16 %v2471, %v2465
    %2856 = vmatprep.subr.bf16.mxu0 %v2473
    %2857 = vmatpush1.bf16.msra.mxu0 %v2472
    %2858 = vmatprep.subr.bf16.mxu0 %v2479
    %2859 = vmatpush1.bf16.msra.mxu0 %v2478
    %2860 = vmatprep.subr.bf16.mxu0 %v2485
    %2861 = vmatpush1.bf16.msra.mxu0 %v2484
    %2862 = vmatprep.subr.bf16.mxu0 %v2491
    %2863 = vmatpush1.bf16.msra.mxu0 %v2490
    %2864 = vmatprep.subr.bf16.mxu0 %v2497
    %2865 = vmatpush1.bf16.msra.mxu0 %v2496
    %2866 = vmatprep.subr.bf16.mxu0 %v2503
    %2867 = vmatpush1.bf16.msra.mxu0 %v2502
    %2868 = vmatprep.subr.bf16.mxu0 %v2509
    %2869 = vmatpush1.bf16.msra.mxu0 %v2508
    %2870 = vmatprep.subr.bf16.mxu0 %v2515
    %2871 = vmatpush1.bf16.msra.mxu0 %v2514
    %2872 = vmatprep.subr.bf16.mxu0 %v2521
    %2873 = vmatpush1.bf16.msra.mxu0 %v2520
    %2874 = vmatprep.subr.bf16.mxu0 %v2527
    %2875 = vmatpush1.bf16.msra.mxu0 %v2526
    %2876 = vmatprep.subr.bf16.mxu0 %v2533
    %2877 = vmatpush1.bf16.msra.mxu0 %v2532
    %2878 = vmatprep.subr.bf16.mxu0 %v2539
    %2879 = vmatpush1.bf16.msra.mxu0 %v2538
    %2880 = vmatprep.subr.bf16.mxu0 %v2545
    %2881 = vmatpush1.bf16.msra.mxu0 %v2544
    %2882 = vmatprep.subr.bf16.mxu0 %v2551
    %2883 = vmatpush1.bf16.msra.mxu0 %v2550
    %2884 = vmatprep.subr.bf16.mxu0 %v2557
    %2885 = vmatpush1.bf16.msra.mxu0 %v2556
    %2886 = vmatprep.subr.bf16.mxu0 %v2563
    %2887 = vmatpush1.bf16.msra.mxu0 %v2562
    %2888 = vmatprep.mubr.bf16.mxu0 %v1669
    %2889 = vmatmul.mubr.bf16.gmra.mrb[0].mxu0 %v1668
    %v2890 = vpop.f32.mrb[0].mxu0
    %v2891 = vadd.f32 %v1869, %v2890
    %v2892 = vpop.f32.mrb[0].mxu0
    %v2893 = vadd.f32 %v1873, %v2892
    %v2894 = vpop.f32.mrb[0].mxu0
    %v2895 = vpop.f32.mrb[0].mxu0
    %2896 = vdwg.mxu0
    %2897 = vmatprep.subr.bf16.mxu0 %v2569
    %2898 = vmatpush1.bf16.msra.mxu0 %v2568
    %2899 = vmatprep.subr.bf16.mxu0 %v2575
    %2900 = vmatpush1.bf16.msra.mxu0 %v2574
    %2901 = vmatprep.subr.bf16.mxu0 %v2581
    %2902 = vmatpush1.bf16.msra.mxu0 %v2580
    %2903 = vmatprep.subr.bf16.mxu0 %v2587
    %2904 = vmatpush1.bf16.msra.mxu0 %v2586
    %2905 = vmatprep.subr.bf16.mxu0 %v2593
    %2906 = vmatpush1.bf16.msra.mxu0 %v2592
    %2907 = vmatprep.subr.bf16.mxu0 %v2599
    %2908 = vmatpush1.bf16.msra.mxu0 %v2598
    %2909 = vmatprep.subr.bf16.mxu0 %v2605
    %2910 = vmatpush1.bf16.msra.mxu0 %v2604
    %2911 = vmatprep.subr.bf16.mxu0 %v2611
    %2912 = vmatpush1.bf16.msra.mxu0 %v2610
    %2913 = vmatprep.subr.bf16.mxu0 %v2617
    %2914 = vmatpush1.bf16.msra.mxu0 %v2616
    %2915 = vmatprep.subr.bf16.mxu0 %v2623
    %2916 = vmatpush1.bf16.msra.mxu0 %v2622
    %2917 = vmatprep.subr.bf16.mxu0 %v2629
    %2918 = vmatpush1.bf16.msra.mxu0 %v2628
    %2919 = vmatprep.subr.bf16.mxu0 %v2635
    %2920 = vmatpush1.bf16.msra.mxu0 %v2634
    %2921 = vmatprep.subr.bf16.mxu0 %v2641
    %2922 = vmatpush1.bf16.msra.mxu0 %v2640
    %2923 = vmatprep.subr.bf16.mxu0 %v2647
    %2924 = vmatpush1.bf16.msra.mxu0 %v2646
    %2925 = vmatprep.subr.bf16.mxu0 %v2653
    %2926 = vmatpush1.bf16.msra.mxu0 %v2652
    %2927 = vmatprep.subr.bf16.mxu0 %v2659
    %2928 = vmatpush1.bf16.msra.mxu0 %v2658
    %2929 = vmatprep.mubr.bf16.mxu0 %v1671
    %2930 = vmatmul.mubr.bf16.gmra.mrb[0].mxu0 %v1670
    %v2931 = vpop.f32.mrb[0].mxu0
    %v2932 = vadd.f32 %v2891, %v2931
    %v2933 = vpop.f32.mrb[0].mxu0
    %v2934 = vadd.f32 %v2893, %v2933
    %v2935 = vpop.f32.mrb[0].mxu0
    %v2936 = vpop.f32.mrb[0].mxu0
    %2937 = vdwg.mxu0
    %2938 = vmatprep.subr.bf16.mxu0 %v2475
    %2939 = vmatpush1.bf16.msra.mxu0 %v2474
    %2940 = vmatprep.subr.bf16.mxu0 %v2481
    %2941 = vmatpush1.bf16.msra.mxu0 %v2480
    %2942 = vmatprep.subr.bf16.mxu0 %v2487
    %2943 = vmatpush1.bf16.msra.mxu0 %v2486
    %2944 = vmatprep.subr.bf16.mxu0 %v2493
    %2945 = vmatpush1.bf16.msra.mxu0 %v2492
    %2946 = vmatprep.subr.bf16.mxu0 %v2499
    %2947 = vmatpush1.bf16.msra.mxu0 %v2498
    %2948 = vmatprep.subr.bf16.mxu0 %v2505
    %2949 = vmatpush1.bf16.msra.mxu0 %v2504
    %2950 = vmatprep.subr.bf16.mxu0 %v2511
    %2951 = vmatpush1.bf16.msra.mxu0 %v2510
    %2952 = vmatprep.subr.bf16.mxu0 %v2517
    %2953 = vmatpush1.bf16.msra.mxu0 %v2516
    %2954 = vmatprep.subr.bf16.mxu0 %v2523
    %2955 = vmatpush1.bf16.msra.mxu0 %v2522
    %2956 = vmatprep.subr.bf16.mxu0 %v2529
    %2957 = vmatpush1.bf16.msra.mxu0 %v2528
    %2958 = vmatprep.subr.bf16.mxu0 %v2535
    %2959 = vmatpush1.bf16.msra.mxu0 %v2534
    %2960 = vmatprep.subr.bf16.mxu0 %v2541
    %2961 = vmatpush1.bf16.msra.mxu0 %v2540
    %2962 = vmatprep.subr.bf16.mxu0 %v2547
    %2963 = vmatpush1.bf16.msra.mxu0 %v2546
    %2964 = vmatprep.subr.bf16.mxu0 %v2553
    %2965 = vmatpush1.bf16.msra.mxu0 %v2552
    %2966 = vmatprep.subr.bf16.mxu0 %v2559
    %2967 = vmatpush1.bf16.msra.mxu0 %v2558
    %2968 = vmatprep.subr.bf16.mxu0 %v2565
    %2969 = vmatpush1.bf16.msra.mxu0 %v2564
    %2970 = vmatprep.mubr.bf16.mxu0 %v1669
    %2971 = vmatmul.mubr.bf16.gmra.mrb[0].mxu0 %v1668
    %v2972 = vpop.f32.mrb[0].mxu0
    %v2973 = vadd.f32 %v1877, %v2972
    %v2974 = vpop.f32.mrb[0].mxu0
    %v2975 = vadd.f32 %v1881, %v2974
    %v2976 = vpop.f32.mrb[0].mxu0
    %v2977 = vpop.f32.mrb[0].mxu0
    %2978 = vdwg.mxu0
    %2979 = vmatprep.subr.bf16.mxu0 %v2571
    %2980 = vmatpush1.bf16.msra.mxu0 %v2570
    %2981 = vmatprep.subr.bf16.mxu0 %v2577
    %2982 = vmatpush1.bf16.msra.mxu0 %v2576
    %2983 = vmatprep.subr.bf16.mxu0 %v2583
    %2984 = vmatpush1.bf16.msra.mxu0 %v2582
    %2985 = vmatprep.subr.bf16.mxu0 %v2589
    %2986 = vmatpush1.bf16.msra.mxu0 %v2588
    %2987 = vmatprep.subr.bf16.mxu0 %v2595
    %2988 = vmatpush1.bf16.msra.mxu0 %v2594
    %2989 = vmatprep.subr.bf16.mxu0 %v2601
    %2990 = vmatpush1.bf16.msra.mxu0 %v2600
    %2991 = vmatprep.subr.bf16.mxu0 %v2607
    %2992 = vmatpush1.bf16.msra.mxu0 %v2606
    %2993 = vmatprep.subr.bf16.mxu0 %v2613
    %2994 = vmatpush1.bf16.msra.mxu0 %v2612
    %2995 = vmatprep.subr.bf16.mxu0 %v2619
    %2996 = vmatpush1.bf16.msra.mxu0 %v2618
    %2997 = vmatprep.subr.bf16.mxu0 %v2625
    %2998 = vmatpush1.bf16.msra.mxu0 %v2624
    %2999 = vmatprep.subr.bf16.mxu0 %v2631
    %3000 = vmatpush1.bf16.msra.mxu0 %v2630
    %3001 = vmatprep.subr.bf16.mxu0 %v2637
    %3002 = vmatpush1.bf16.msra.mxu0 %v2636
    %3003 = vmatprep.subr.bf16.mxu0 %v2643
    %3004 = vmatpush1.bf16.msra.mxu0 %v2642
    %3005 = vmatprep.subr.bf16.mxu0 %v2649
    %3006 = vmatpush1.bf16.msra.mxu0 %v2648
    %3007 = vmatprep.subr.bf16.mxu0 %v2655
    %3008 = vmatpush1.bf16.msra.mxu0 %v2654
    %3009 = vmatprep.subr.bf16.mxu0 %v2661
    %3010 = vmatpush1.bf16.msra.mxu0 %v2660
    %3011 = vmatprep.mubr.bf16.mxu0 %v1671
    %3012 = vmatmul.mubr.bf16.gmra.mrb[0].mxu0 %v1670
    %v3013 = vpop.f32.mrb[0].mxu0
    %v3014 = vadd.f32 %v2973, %v3013
    %v3015 = vpop.f32.mrb[0].mxu0
    %v3016 = vadd.f32 %v2975, %v3015
    %v3017 = vpop.f32.mrb[0].mxu0
    %v3018 = vpop.f32.mrb[0].mxu0
    %3019 = vdwg.mxu0
    %3020 = vmatprep.subr.bf16.mxu0 %v2477
    %3021 = vmatpush1.bf16.msra.mxu0 %v2476
    %3022 = vmatprep.subr.bf16.mxu0 %v2483
    %3023 = vmatpush1.bf16.msra.mxu0 %v2482
    %3024 = vmatprep.subr.bf16.mxu0 %v2489
    %3025 = vmatpush1.bf16.msra.mxu0 %v2488
    %3026 = vmatprep.subr.bf16.mxu0 %v2495
    %3027 = vmatpush1.bf16.msra.mxu0 %v2494
    %3028 = vmatprep.subr.bf16.mxu0 %v2501
    %3029 = vmatpush1.bf16.msra.mxu0 %v2500
    %3030 = vmatprep.subr.bf16.mxu0 %v2507
    %3031 = vmatpush1.bf16.msra.mxu0 %v2506
    %3032 = vmatprep.subr.bf16.mxu0 %v2513
    %3033 = vmatpush1.bf16.msra.mxu0 %v2512
    %3034 = vmatprep.subr.bf16.mxu0 %v2519
    %3035 = vmatpush1.bf16.msra.mxu0 %v2518
    %3036 = vmatprep.subr.bf16.mxu0 %v2525
    %3037 = vmatpush1.bf16.msra.mxu0 %v2524
    %3038 = vmatprep.subr.bf16.mxu0 %v2531
    %3039 = vmatpush1.bf16.msra.mxu0 %v2530
    %3040 = vmatprep.subr.bf16.mxu0 %v2537
    %3041 = vmatpush1.bf16.msra.mxu0 %v2536
    %3042 = vmatprep.subr.bf16.mxu0 %v2543
    %3043 = vmatpush1.bf16.msra.mxu0 %v2542
    %3044 = vmatprep.subr.bf16.mxu0 %v2549
    %3045 = vmatpush1.bf16.msra.mxu0 %v2548
    %3046 = vmatprep.subr.bf16.mxu0 %v2555
    %3047 = vmatpush1.bf16.msra.mxu0 %v2554
    %3048 = vmatprep.subr.bf16.mxu0 %v2561
    %3049 = vmatpush1.bf16.msra.mxu0 %v2560
    %3050 = vmatprep.subr.bf16.mxu0 %v2567
    %3051 = vmatpush1.bf16.msra.mxu0 %v2566
    %3052 = vmatprep.mubr.bf16.mxu0 %v1669
    %3053 = vmatmul.mubr.bf16.gmra.mrb[0].mxu0 %v1668
    %v3054 = vpop.f32.mrb[0].mxu0
    %v3055 = vadd.f32 %v1885, %v3054
    %v3056 = vpop.f32.mrb[0].mxu0
    %v3057 = vadd.f32 %v1889, %v3056
    %v3058 = vpop.f32.mrb[0].mxu0
    %v3059 = vpop.f32.mrb[0].mxu0
    %3060 = vdwg.mxu0
    %3061 = vmatprep.subr.bf16.mxu0 %v2573
    %3062 = vmatpush1.bf16.msra.mxu0 %v2572
    %3063 = vmatprep.subr.bf16.mxu0 %v2579
    %3064 = vmatpush1.bf16.msra.mxu0 %v2578
    %3065 = vmatprep.subr.bf16.mxu0 %v2585
    %3066 = vmatpush1.bf16.msra.mxu0 %v2584
    %3067 = vmatprep.subr.bf16.mxu0 %v2591
    %3068 = vmatpush1.bf16.msra.mxu0 %v2590
    %3069 = vmatprep.subr.bf16.mxu0 %v2597
    %3070 = vmatpush1.bf16.msra.mxu0 %v2596
    %3071 = vmatprep.subr.bf16.mxu0 %v2603
    %3072 = vmatpush1.bf16.msra.mxu0 %v2602
    %3073 = vmatprep.subr.bf16.mxu0 %v2609
    %3074 = vmatpush1.bf16.msra.mxu0 %v2608
    %3075 = vmatprep.subr.bf16.mxu0 %v2615
    %3076 = vmatpush1.bf16.msra.mxu0 %v2614
    %3077 = vmatprep.subr.bf16.mxu0 %v2621
    %3078 = vmatpush1.bf16.msra.mxu0 %v2620
    %3079 = vmatprep.subr.bf16.mxu0 %v2627
    %3080 = vmatpush1.bf16.msra.mxu0 %v2626
    %3081 = vmatprep.subr.bf16.mxu0 %v2633
    %3082 = vmatpush1.bf16.msra.mxu0 %v2632
    %3083 = vmatprep.subr.bf16.mxu0 %v2639
    %3084 = vmatpush1.bf16.msra.mxu0 %v2638
    %3085 = vmatprep.subr.bf16.mxu0 %v2645
    %3086 = vmatpush1.bf16.msra.mxu0 %v2644
    %3087 = vmatprep.subr.bf16.mxu0 %v2651
    %3088 = vmatpush1.bf16.msra.mxu0 %v2650
    %3089 = vmatprep.subr.bf16.mxu0 %v2657
    %3090 = vmatpush1.bf16.msra.mxu0 %v2656
    %3091 = vmatprep.subr.bf16.mxu0 %v2663
    %3092 = vmatpush1.bf16.msra.mxu0 %v2662
    %3093 = vmatprep.mubr.bf16.mxu0 %v1671
    %3094 = vmatmul.mubr.bf16.gmra.mrb[0].mxu0 %v1670
    %v3095 = vpop.f32.mrb[0].mxu0
    %v3096 = vadd.f32 %v3055, %v3095
    %v3097 = vpop.f32.mrb[0].mxu0
    %v3098 = vadd.f32 %v3057, %v3097
    %v3099 = vpop.f32.mrb[0].mxu0
    %v3100 = vpop.f32.mrb[0].mxu0
    %3101 = vdwg.mxu0
    %v3102 = vmax.f32 %v2932, 0.0
    %v3103 = vmax.f32 %v2934, 0.0
    %v3104 = vmax.f32 %v3014, 0.0
    %v3105 = vmax.f32 %v3016, 0.0
    %v3106 = vmax.f32 %v3096, 0.0
    %v3107 = vmax.f32 %v3098, 0.0
    %v3108 = vpack.c.bf16 %v3102, %v3102
    %v3109 = vpack.c.bf16 %v3103, %v3103
    %v3110 = vpack.c.bf16 %v3104, %v3104
    %v3111 = vpack.c.bf16 %v3105, %v3105
    %v3112 = vpack.c.bf16 %v3106, %v3106
    %v3113 = vpack.c.bf16 %v3107, %v3107
    %v3114 = vld [vmem:[#allocation8] sm:$0xf]
    %v3115 = vld [vmem:[#allocation8 + $0x4] sm:$0xf]
    %v3116 = vld [vmem:[#allocation8 + $0x8] sm:$0xf]
    %v3117 = vld [vmem:[#allocation8 + $0xc] sm:$0xf]
    %v3118 = vld [vmem:[#allocation8 + $0x10] sm:$0xf]
    %v3119 = vld [vmem:[#allocation8 + $0x14] sm:$0xf]
    %v3120 = vld [vmem:[#allocation8 + $0x18] sm:$0xf]
    %v3121 = vld [vmem:[#allocation8 + $0x1c] sm:$0xf]
    %v3122 = vld [vmem:[#allocation8 + $0x20] sm:$0xf]
    %v3123 = vld [vmem:[#allocation8 + $0x24] sm:$0xf]
    %v3124 = vld [vmem:[#allocation8 + $0x28] sm:$0xf]
    %v3125 = vld [vmem:[#allocation8 + $0x2c] sm:$0xf]
    %v3126 = vld [vmem:[#allocation8 + $0x30] sm:$0xf]
    %v3127 = vld [vmem:[#allocation8 + $0x34] sm:$0xf]
    %v3128 = vld [vmem:[#allocation8 + $0x38] sm:$0xf]
    %v3129 = vld [vmem:[#allocation8 + $0x3c] sm:$0xf]
    %v3130 = vld [vmem:[#allocation8 + $0x40] sm:$0xf]
    %v3131 = vld [vmem:[#allocation8 + $0x44] sm:$0xf]
    %v3132 = vld [vmem:[#allocation8 + $0x48] sm:$0xf]
    %v3133 = vld [vmem:[#allocation8 + $0x4c] sm:$0xf]
    %v3134 = vld [vmem:[#allocation8 + $0x50] sm:$0xf]
    %v3135 = vld [vmem:[#allocation8 + $0x54] sm:$0xf]
    %v3136 = vld [vmem:[#allocation8 + $0x58] sm:$0xf]
    %v3137 = vld [vmem:[#allocation8 + $0x5c] sm:$0xf]
    %v3138 = vld [vmem:[#allocation8 + $0x60] sm:$0xf]
    %v3139 = vld [vmem:[#allocation8 + $0x64] sm:$0xf]
    %v3140 = vld [vmem:[#allocation8 + $0x68] sm:$0xf]
    %v3141 = vld [vmem:[#allocation8 + $0x6c] sm:$0xf]
    %v3142 = vld [vmem:[#allocation8 + $0x70] sm:$0xf]
    %v3143 = vld [vmem:[#allocation8 + $0x74] sm:$0xf]
    %v3144 = vld [vmem:[#allocation8 + $0x78] sm:$0xf]
    %v3145 = vld [vmem:[#allocation8 + $0x7c] sm:$0xf]
    %v3146 = vld [vmem:[#allocation8 + $0x80] sm:$0xf]
    %v3147 = vld [vmem:[#allocation8 + $0x84] sm:$0xf]
    %v3148 = vld [vmem:[#allocation8 + $0x88] sm:$0xf]
    %v3149 = vld [vmem:[#allocation8 + $0x8c] sm:$0xf]
    %v3150 = vld [vmem:[#allocation8 + $0x90] sm:$0xf]
    %v3151 = vld [vmem:[#allocation8 + $0x94] sm:$0xf]
    %v3152 = vld [vmem:[#allocation8 + $0x98] sm:$0xf]
    %v3153 = vld [vmem:[#allocation8 + $0x9c] sm:$0xf]
    %v3154 = vld [vmem:[#allocation8 + $0xa0] sm:$0xf]
    %v3155 = vld [vmem:[#allocation8 + $0xa4] sm:$0xf]
    %v3156 = vld [vmem:[#allocation8 + $0xa8] sm:$0xf]
    %v3157 = vld [vmem:[#allocation8 + $0xac] sm:$0xf]
    %v3158 = vld [vmem:[#allocation8 + $0xb0] sm:$0xf]
    %v3159 = vld [vmem:[#allocation8 + $0xb4] sm:$0xf]
    %v3160 = vld [vmem:[#allocation8 + $0xb8] sm:$0xf]
    %v3161 = vld [vmem:[#allocation8 + $0xbc] sm:$0xf]
    %v3162 = vld [vmem:[#allocation8 + $0xc0] sm:$0xf]
    %v3163 = vld [vmem:[#allocation8 + $0xc4] sm:$0xf]
    %v3164 = vld [vmem:[#allocation8 + $0xc8] sm:$0xf]
    %v3165 = vld [vmem:[#allocation8 + $0xcc] sm:$0xf]
    %v3166 = vld [vmem:[#allocation8 + $0xd0] sm:$0xf]
    %v3167 = vld [vmem:[#allocation8 + $0xd4] sm:$0xf]
    %v3168 = vld [vmem:[#allocation8 + $0xd8] sm:$0xf]
    %v3169 = vld [vmem:[#allocation8 + $0xdc] sm:$0xf]
    %v3170 = vld [vmem:[#allocation8 + $0xe0] sm:$0xf]
    %v3171 = vld [vmem:[#allocation8 + $0xe4] sm:$0xf]
    %v3172 = vld [vmem:[#allocation8 + $0xe8] sm:$0xf]
    %v3173 = vld [vmem:[#allocation8 + $0xec] sm:$0xf]
    %v3174 = vld [vmem:[#allocation8 + $0xf0] sm:$0xf]
    %v3175 = vld [vmem:[#allocation8 + $0xf4] sm:$0xf]
    %v3176 = vld [vmem:[#allocation8 + $0xf8] sm:$0xf]
    %v3177 = vld [vmem:[#allocation8 + $0xfc] sm:$0xf]
    %v3178 = vld [vmem:[#allocation8 + $0x100] sm:$0xf]
    %v3179 = vld [vmem:[#allocation8 + $0x104] sm:$0xf]
    %v3180 = vld [vmem:[#allocation8 + $0x108] sm:$0xf]
    %v3181 = vld [vmem:[#allocation8 + $0x10c] sm:$0xf]
    %v3182 = vld [vmem:[#allocation8 + $0x110] sm:$0xf]
    %v3183 = vld [vmem:[#allocation8 + $0x114] sm:$0xf]
    %v3184 = vld [vmem:[#allocation8 + $0x118] sm:$0xf]
    %v3185 = vld [vmem:[#allocation8 + $0x11c] sm:$0xf]
    %v3186 = vld [vmem:[#allocation8 + $0x120] sm:$0xf]
    %v3187 = vld [vmem:[#allocation8 + $0x124] sm:$0xf]
    %v3188 = vld [vmem:[#allocation8 + $0x128] sm:$0xf]
    %v3189 = vld [vmem:[#allocation8 + $0x12c] sm:$0xf]
    %v3190 = vld [vmem:[#allocation8 + $0x130] sm:$0xf]
    %v3191 = vld [vmem:[#allocation8 + $0x134] sm:$0xf]
    %v3192 = vld [vmem:[#allocation8 + $0x138] sm:$0xf]
    %v3193 = vld [vmem:[#allocation8 + $0x13c] sm:$0xf]
    %v3194 = vld [vmem:[#allocation8 + $0x140] sm:$0xf]
    %v3195 = vld [vmem:[#allocation8 + $0x144] sm:$0xf]
    %v3196 = vld [vmem:[#allocation8 + $0x148] sm:$0xf]
    %v3197 = vld [vmem:[#allocation8 + $0x14c] sm:$0xf]
    %v3198 = vld [vmem:[#allocation8 + $0x150] sm:$0xf]
    %v3199 = vld [vmem:[#allocation8 + $0x154] sm:$0xf]
    %v3200 = vld [vmem:[#allocation8 + $0x158] sm:$0xf]
    %v3201 = vld [vmem:[#allocation8 + $0x15c] sm:$0xf]
    %v3202 = vld [vmem:[#allocation8 + $0x160] sm:$0xf]
    %v3203 = vld [vmem:[#allocation8 + $0x164] sm:$0xf]
    %v3204 = vld [vmem:[#allocation8 + $0x168] sm:$0xf]
    %v3205 = vld [vmem:[#allocation8 + $0x16c] sm:$0xf]
    %v3206 = vld [vmem:[#allocation8 + $0x170] sm:$0xf]
    %v3207 = vld [vmem:[#allocation8 + $0x174] sm:$0xf]
    %v3208 = vld [vmem:[#allocation8 + $0x178] sm:$0xf]
    %v3209 = vld [vmem:[#allocation8 + $0x17c] sm:$0xf]
    %v3210 = vld [vmem:[%s6] sm:$0x1]
    %v3212 = vlaneseq
    %v3213 = vshrl.u32 %v3212, 7
    %v3214 = vsub.s32 0, %v3213
    %v3215 = vrot.slane %v3210, %v3214
    %v3313 = vunpack.c.l.b16 %v3114
    %v3314 = vunpack.c.l.b16 %v3115
    %v3315 = vunpack.c.l.b16 %v3116
    %v3316 = vunpack.c.l.b16 %v3117
    %v3317 = vunpack.c.l.b16 %v3118
    %v3318 = vunpack.c.l.b16 %v3119
    %v3319 = vunpack.c.l.b16 %v3120
    %v3320 = vunpack.c.l.b16 %v3121
    %v3321 = vunpack.c.l.b16 %v3122
    %v3322 = vunpack.c.l.b16 %v3123
    %v3323 = vunpack.c.l.b16 %v3124
    %v3324 = vunpack.c.l.b16 %v3125
    %v3325 = vunpack.c.l.b16 %v3126
    %v3326 = vunpack.c.l.b16 %v3127
    %v3327 = vunpack.c.l.b16 %v3128
    %v3328 = vunpack.c.l.b16 %v3129
    %v3329 = vunpack.c.l.b16 %v3130
    %v3330 = vunpack.c.l.b16 %v3131
    %v3331 = vunpack.c.l.b16 %v3132
    %v3332 = vunpack.c.l.b16 %v3133
    %v3333 = vunpack.c.l.b16 %v3134
    %v3334 = vunpack.c.l.b16 %v3135
    %v3335 = vunpack.c.l.b16 %v3136
    %v3336 = vunpack.c.l.b16 %v3137
    %v3337 = vunpack.c.l.b16 %v3138
    %v3338 = vunpack.c.l.b16 %v3139
    %v3339 = vunpack.c.l.b16 %v3140
    %v3340 = vunpack.c.l.b16 %v3141
    %v3341 = vunpack.c.l.b16 %v3142
    %v3342 = vunpack.c.l.b16 %v3143
    %v3343 = vunpack.c.l.b16 %v3144
    %v3344 = vunpack.c.l.b16 %v3145
    %v3345 = vunpack.c.l.b16 %v3146
    %v3346 = vunpack.c.l.b16 %v3147
    %v3347 = vunpack.c.l.b16 %v3148
    %v3348 = vunpack.c.l.b16 %v3149
    %v3349 = vunpack.c.l.b16 %v3150
    %v3350 = vunpack.c.l.b16 %v3151
    %v3351 = vunpack.c.l.b16 %v3152
    %v3352 = vunpack.c.l.b16 %v3153
    %v3353 = vunpack.c.l.b16 %v3154
    %v3354 = vunpack.c.l.b16 %v3155
    %v3355 = vunpack.c.l.b16 %v3156
    %v3356 = vunpack.c.l.b16 %v3157
    %v3357 = vunpack.c.l.b16 %v3158
    %v3358 = vunpack.c.l.b16 %v3159
    %v3359 = vunpack.c.l.b16 %v3160
    %v3360 = vunpack.c.l.b16 %v3161
    %v3361 = vunpack.c.l.b16 %v3162
    %v3362 = vunpack.c.l.b16 %v3163
    %v3363 = vunpack.c.l.b16 %v3164
    %v3364 = vunpack.c.l.b16 %v3165
    %v3365 = vunpack.c.l.b16 %v3166
    %v3366 = vunpack.c.l.b16 %v3167
    %v3367 = vunpack.c.l.b16 %v3168
    %v3368 = vunpack.c.l.b16 %v3169
    %v3369 = vunpack.c.l.b16 %v3170
    %v3370 = vunpack.c.l.b16 %v3171
    %v3371 = vunpack.c.l.b16 %v3172
    %v3372 = vunpack.c.l.b16 %v3173
    %v3373 = vunpack.c.l.b16 %v3174
    %v3374 = vunpack.c.l.b16 %v3175
    %v3375 = vunpack.c.l.b16 %v3176
    %v3376 = vunpack.c.l.b16 %v3177
    %v3377 = vunpack.c.l.b16 %v3178
    %v3378 = vunpack.c.l.b16 %v3179
    %v3379 = vunpack.c.l.b16 %v3180
    %v3380 = vunpack.c.l.b16 %v3181
    %v3381 = vunpack.c.l.b16 %v3182
    %v3382 = vunpack.c.l.b16 %v3183
    %v3383 = vunpack.c.l.b16 %v3184
    %v3384 = vunpack.c.l.b16 %v3185
    %v3385 = vunpack.c.l.b16 %v3186
    %v3386 = vunpack.c.l.b16 %v3187
    %v3387 = vunpack.c.l.b16 %v3188
    %v3388 = vunpack.c.l.b16 %v3189
    %v3389 = vunpack.c.l.b16 %v3190
    %v3390 = vunpack.c.l.b16 %v3191
    %v3391 = vunpack.c.l.b16 %v3192
    %v3392 = vunpack.c.l.b16 %v3193
    %v3393 = vunpack.c.l.b16 %v3194
    %v3394 = vunpack.c.l.b16 %v3195
    %v3395 = vunpack.c.l.b16 %v3196
    %v3396 = vunpack.c.l.b16 %v3197
    %v3397 = vunpack.c.l.b16 %v3198
    %v3398 = vunpack.c.l.b16 %v3199
    %v3399 = vunpack.c.l.b16 %v3200
    %v3400 = vunpack.c.l.b16 %v3201
    %v3401 = vunpack.c.l.b16 %v3202
    %v3402 = vunpack.c.l.b16 %v3203
    %v3403 = vunpack.c.l.b16 %v3204
    %v3404 = vunpack.c.l.b16 %v3205
    %v3405 = vunpack.c.l.b16 %v3206
    %v3406 = vunpack.c.l.b16 %v3207
    %v3407 = vunpack.c.l.b16 %v3208
    %v3408 = vunpack.c.l.b16 %v3209
    %v3409 = vpack.c.b16 %v3314, %v3313
    %v3410 = vpack.c.b16 %v3316, %v3315
    %v3411 = vpack.c.b16 %v3318, %v3317
    %v3412 = vpack.c.b16 %v3320, %v3319
    %v3413 = vpack.c.b16 %v3322, %v3321
    %v3414 = vpack.c.b16 %v3324, %v3323
    %v3415 = vpack.c.b16 %v3326, %v3325
    %v3416 = vpack.c.b16 %v3328, %v3327
    %v3417 = vpack.c.b16 %v3330, %v3329
    %v3418 = vpack.c.b16 %v3332, %v3331
    %v3419 = vpack.c.b16 %v3334, %v3333
    %v3420 = vpack.c.b16 %v3336, %v3335
    %v3421 = vpack.c.b16 %v3338, %v3337
    %v3422 = vpack.c.b16 %v3340, %v3339
    %v3423 = vpack.c.b16 %v3342, %v3341
    %v3424 = vpack.c.b16 %v3344, %v3343
    %v3425 = vpack.c.b16 %v3346, %v3345
    %v3426 = vpack.c.b16 %v3348, %v3347
    %v3427 = vpack.c.b16 %v3350, %v3349
    %v3428 = vpack.c.b16 %v3352, %v3351
    %v3429 = vpack.c.b16 %v3354, %v3353
    %v3430 = vpack.c.b16 %v3356, %v3355
    %v3431 = vpack.c.b16 %v3358, %v3357
    %v3432 = vpack.c.b16 %v3360, %v3359
    %v3433 = vpack.c.b16 %v3362, %v3361
    %v3434 = vpack.c.b16 %v3364, %v3363
    %v3435 = vpack.c.b16 %v3366, %v3365
    %v3436 = vpack.c.b16 %v3368, %v3367
    %v3437 = vpack.c.b16 %v3370, %v3369
    %v3438 = vpack.c.b16 %v3372, %v3371
    %v3439 = vpack.c.b16 %v3374, %v3373
    %v3440 = vpack.c.b16 %v3376, %v3375
    %v3441 = vpack.c.b16 %v3378, %v3377
    %v3442 = vpack.c.b16 %v3380, %v3379
    %v3443 = vpack.c.b16 %v3382, %v3381
    %v3444 = vpack.c.b16 %v3384, %v3383
    %v3445 = vpack.c.b16 %v3386, %v3385
    %v3446 = vpack.c.b16 %v3388, %v3387
    %v3447 = vpack.c.b16 %v3390, %v3389
    %v3448 = vpack.c.b16 %v3392, %v3391
    %v3449 = vpack.c.b16 %v3394, %v3393
    %v3450 = vpack.c.b16 %v3396, %v3395
    %v3451 = vpack.c.b16 %v3398, %v3397
    %v3452 = vpack.c.b16 %v3400, %v3399
    %v3453 = vpack.c.b16 %v3402, %v3401
    %v3454 = vpack.c.b16 %v3404, %v3403
    %v3455 = vpack.c.b16 %v3406, %v3405
    %v3456 = vpack.c.b16 %v3408, %v3407
    %3505 = vmatprep.subr.bf16.mxu0 0
    %3506 = vmatpush1.bf16.msra.mxu0 %v3409
    %3507 = vmatprep.subr.bf16.mxu0 0
    %3508 = vmatpush1.bf16.msra.mxu0 %v3410
    %3509 = vmatprep.subr.bf16.mxu0 0
    %3510 = vmatpush1.bf16.msra.mxu0 %v3411
    %3511 = vmatprep.subr.bf16.mxu0 0
    %3512 = vmatpush1.bf16.msra.mxu0 %v3412
    %3513 = vmatprep.subr.bf16.mxu0 0
    %3514 = vmatpush1.bf16.msra.mxu0 %v3413
    %3515 = vmatprep.subr.bf16.mxu0 0
    %3516 = vmatpush1.bf16.msra.mxu0 %v3414
    %3517 = vmatprep.subr.bf16.mxu0 0
    %3518 = vmatpush1.bf16.msra.mxu0 %v3415
    %3519 = vmatprep.subr.bf16.mxu0 0
    %3520 = vmatpush1.bf16.msra.mxu0 %v3416
    %3521 = vmatprep.subr.bf16.mxu0 0
    %3522 = vmatpush1.bf16.msra.mxu0 %v3417
    %3523 = vmatprep.subr.bf16.mxu0 0
    %3524 = vmatpush1.bf16.msra.mxu0 %v3418
    %3525 = vmatprep.subr.bf16.mxu0 0
    %3526 = vmatpush1.bf16.msra.mxu0 %v3419
    %3527 = vmatprep.subr.bf16.mxu0 0
    %3528 = vmatpush1.bf16.msra.mxu0 %v3420
    %3529 = vmatprep.subr.bf16.mxu0 0
    %3530 = vmatpush1.bf16.msra.mxu0 %v3421
    %3531 = vmatprep.subr.bf16.mxu0 0
    %3532 = vmatpush1.bf16.msra.mxu0 %v3422
    %3533 = vmatprep.subr.bf16.mxu0 0
    %3534 = vmatpush1.bf16.msra.mxu0 %v3423
    %3535 = vmatprep.subr.bf16.mxu0 0
    %3536 = vmatpush1.bf16.msra.mxu0 %v3424
    %3537 = vmatprep.mubr.bf16.mxu0 %v3109
    %3538 = vmatmul.mubr.bf16.gmra.mrb[0].mxu0 %v3108
    %v3539 = vpop.f32.mrb[0].mxu0
    %v3540 = vadd.f32 %v3215, %v3539
    %v3541 = vpop.f32.mrb[0].mxu0
    %v3542 = vpop.f32.mrb[0].mxu0
    %v3543 = vpop.f32.mrb[0].mxu0
    %3544 = vdwg.mxu0
    %3545 = vmatprep.subr.bf16.mxu0 0
    %3546 = vmatpush1.bf16.msra.mxu0 %v3425
    %3547 = vmatprep.subr.bf16.mxu0 0
    %3548 = vmatpush1.bf16.msra.mxu0 %v3426
    %3549 = vmatprep.subr.bf16.mxu0 0
    %3550 = vmatpush1.bf16.msra.mxu0 %v3427
    %3551 = vmatprep.subr.bf16.mxu0 0
    %3552 = vmatpush1.bf16.msra.mxu0 %v3428
    %3553 = vmatprep.subr.bf16.mxu0 0
    %3554 = vmatpush1.bf16.msra.mxu0 %v3429
    %3555 = vmatprep.subr.bf16.mxu0 0
    %3556 = vmatpush1.bf16.msra.mxu0 %v3430
    %3557 = vmatprep.subr.bf16.mxu0 0
    %3558 = vmatpush1.bf16.msra.mxu0 %v3431
    %3559 = vmatprep.subr.bf16.mxu0 0
    %3560 = vmatpush1.bf16.msra.mxu0 %v3432
    %3561 = vmatprep.subr.bf16.mxu0 0
    %3562 = vmatpush1.bf16.msra.mxu0 %v3433
    %3563 = vmatprep.subr.bf16.mxu0 0
    %3564 = vmatpush1.bf16.msra.mxu0 %v3434
    %3565 = vmatprep.subr.bf16.mxu0 0
    %3566 = vmatpush1.bf16.msra.mxu0 %v3435
    %3567 = vmatprep.subr.bf16.mxu0 0
    %3568 = vmatpush1.bf16.msra.mxu0 %v3436
    %3569 = vmatprep.subr.bf16.mxu0 0
    %3570 = vmatpush1.bf16.msra.mxu0 %v3437
    %3571 = vmatprep.subr.bf16.mxu0 0
    %3572 = vmatpush1.bf16.msra.mxu0 %v3438
    %3573 = vmatprep.subr.bf16.mxu0 0
    %3574 = vmatpush1.bf16.msra.mxu0 %v3439
    %3575 = vmatprep.subr.bf16.mxu0 0
    %3576 = vmatpush1.bf16.msra.mxu0 %v3440
    %3577 = vmatprep.mubr.bf16.mxu0 %v3111
    %3578 = vmatmul.mubr.bf16.gmra.mrb[0].mxu0 %v3110
    %v3579 = vpop.f32.mrb[0].mxu0
    %v3580 = vadd.f32 %v3540, %v3579
    %v3581 = vpop.f32.mrb[0].mxu0
    %v3582 = vpop.f32.mrb[0].mxu0
    %v3583 = vpop.f32.mrb[0].mxu0
    %3584 = vdwg.mxu0
    %3585 = vmatprep.subr.bf16.mxu0 0
    %3586 = vmatpush1.bf16.msra.mxu0 %v3441
    %3587 = vmatprep.subr.bf16.mxu0 0
    %3588 = vmatpush1.bf16.msra.mxu0 %v3442
    %3589 = vmatprep.subr.bf16.mxu0 0
    %3590 = vmatpush1.bf16.msra.mxu0 %v3443
    %3591 = vmatprep.subr.bf16.mxu0 0
    %3592 = vmatpush1.bf16.msra.mxu0 %v3444
    %3593 = vmatprep.subr.bf16.mxu0 0
    %3594 = vmatpush1.bf16.msra.mxu0 %v3445
    %3595 = vmatprep.subr.bf16.mxu0 0
    %3596 = vmatpush1.bf16.msra.mxu0 %v3446
    %3597 = vmatprep.subr.bf16.mxu0 0
    %3598 = vmatpush1.bf16.msra.mxu0 %v3447
    %3599 = vmatprep.subr.bf16.mxu0 0
    %3600 = vmatpush1.bf16.msra.mxu0 %v3448
    %3601 = vmatprep.subr.bf16.mxu0 0
    %3602 = vmatpush1.bf16.msra.mxu0 %v3449
    %3603 = vmatprep.subr.bf16.mxu0 0
    %3604 = vmatpush1.bf16.msra.mxu0 %v3450
    %3605 = vmatprep.subr.bf16.mxu0 0
    %3606 = vmatpush1.bf16.msra.mxu0 %v3451
    %3607 = vmatprep.subr.bf16.mxu0 0
    %3608 = vmatpush1.bf16.msra.mxu0 %v3452
    %3609 = vmatprep.subr.bf16.mxu0 0
    %3610 = vmatpush1.bf16.msra.mxu0 %v3453
    %3611 = vmatprep.subr.bf16.mxu0 0
    %3612 = vmatpush1.bf16.msra.mxu0 %v3454
    %3613 = vmatprep.subr.bf16.mxu0 0
    %3614 = vmatpush1.bf16.msra.mxu0 %v3455
    %3615 = vmatprep.subr.bf16.mxu0 0
    %3616 = vmatpush1.bf16.msra.mxu0 %v3456
    %3617 = vmatprep.mubr.bf16.mxu0 %v3113
    %3618 = vmatmul.mubr.bf16.gmra.mrb[0].mxu0 %v3112
    %v3619 = vpop.f32.mrb[0].mxu0
    %v3620 = vadd.f32 %v3580, %v3619
    %v3621 = vpop.f32.mrb[0].mxu0
    %v3622 = vpop.f32.mrb[0].mxu0
    %v3623 = vpop.f32.mrb[0].mxu0
    %3624 = vdwg.mxu0
    %v3625 = vpack.c.bf16 %v3620, %v3620
    %3626 = vst [vmem:[#allocation10] sm:$0x1] %v3625
    // Predicated region
    $region46: #{tpu_custom_call.1} parent=1 // pred_check
      _
    $region47: #{tpu_custom_call.1} parent=1 // pred_check_branch
      %3628 = sbr.rel (0) target = $region49
    $region48: #{tpu_custom_call.1} parent=1 // pred_region
      %s3630 = ssub.s32 16, 16
      %3631 = vsyncadd [#allocation4], %s3630
      %s3633 = sshll.u32 [#allocation10], 4
      %s3634 = int_to_ptr.vmem [resolvable:$true] %s3633
      %3636 = dma.vmem_to_hbm [thread:$0]  %s3634, 16, %s7, [#allocation4]
    $region49: #{tpu_custom_call.1} parent=1 // pred_fallthru
      _
    // Predicated region
    $region50: #{tpu_custom_call.1} parent=1 // pred_check
      _
    $region51: #{tpu_custom_call.1} parent=1 // pred_check_branch
      %3638 = sbr.rel (0) target = $region53
    $region52: #{tpu_custom_call.1} parent=1 // pred_region
      %3639 = dma.done [#allocation4], 16
    $region53: #{tpu_custom_call.1} parent=1 // pred_fallthru
      _
    %3640 = vsyncpa [#allocation3], 1
    %3641 = vsyncpa [#allocation6], 1
    %3642 = vsyncpa [#allocation9], 1
    %3643 = vsyncpa [#allocation4], 1

</llo_original>
